<compile_context>
chip_gen: v7x
topology: tpu7x:2x2x1
jax: 0.10.0
libtpu: 0.0.40
codegen_flags: <defaults>
</compile_context>

<pallas_src>
import jax
import jax.numpy as jnp
from jax import lax
from jax.experimental import pallas as pl
from jax.experimental.pallas import tpu as pltpu

EPS = 1e-5


def _residual_block_kernel(x_ref, w1_ref, w2_ref,
                           g1_ref, be1_ref, g2_ref, be2_ref,
                           fold_ref, foldt_ref,
                           out_ref, pad_ref):
    # x_ref    : (N, H, W*C)        lane-dense input slab (also the residual)
    # w*_ref   : (3, W*C, W*C)      block-Toeplitz conv matrices (one per kh)
    # g*/be*   : (1, C)             BN gamma / beta
    # fold_ref : (W*C, C)           sums the W lane-blocks -> per-channel
    # foldt_ref: (C, W*C)           broadcasts per-channel -> per-lane
    # out_ref  : (N, H, W*C)
    # pad_ref  : (N, H+2, W*C)      scratch: H-padded conv input (reused)
    N, H, WC = x_ref.shape
    C = fold_ref.shape[1]
    W = WC // C
    NH = N * H
    inv_nhw = 1.0 / float(N * H * W)

    fold = fold_ref[...]
    foldt = foldt_ref[...]
    xv = x_ref[...]                                   # single VMEM load, reused

    # Zero only the 2 halo rows per image (W padding is folded into the weight
    # matrices, so there is no lane halo and no full-buffer zeroing).
    zrow = jnp.zeros((N, 1, WC), jnp.float32)
    pad_ref[:, 0:1, :] = zrow
    pad_ref[:, H + 1:H + 2, :] = zrow

    # conv1 input: interior = x (lane-aligned full-width store).
    pad_ref[:, 1:H + 1, :] = xv

    def conv3x3(w_ref):
        # One (N*H, W*C) x (W*C, W*C) matmul per kh tap row (3 total).
        acc = jnp.zeros((NH, WC), jnp.float32)
        for kh in range(3):                           # static unroll (3 taps)
            lhs = pad_ref[:, kh:kh + H, :].reshape(NH, WC)
            acc = acc + jnp.dot(lhs, w_ref[kh],
                                preferred_element_type=jnp.float32)
        return acc

    def bn_affine(y, g_ref, be_ref):
        # Training-mode BatchNorm: per-channel batch mean / biased variance.
        # Channel c occupies lanes {w*C + c}; `fold` collapses the W blocks.
        lane_sum = jnp.sum(y, axis=0, keepdims=True)                     # (1, W*C)
        mean_c = jnp.dot(lane_sum, fold,
                         preferred_element_type=jnp.float32) * inv_nhw   # (1, C)
        mean_t = jnp.dot(mean_c, foldt,
                         preferred_element_type=jnp.float32)             # (1, W*C)
        d = y - mean_t
        var_c = jnp.dot(jnp.sum(d * d, axis=0, keepdims=True), fold,
                        preferred_element_type=jnp.float32) * inv_nhw    # (1, C)
        # Hoist per-channel scale/shift, then one per-lane FMA on the slab.
        scale_c = g_ref[...] * lax.rsqrt(var_c + EPS)                    # EUP rsqrt
        shift_c = be_ref[...] - mean_c * scale_c
        scale_t = jnp.dot(scale_c, foldt, preferred_element_type=jnp.float32)
        shift_t = jnp.dot(shift_c, foldt, preferred_element_type=jnp.float32)
        return scale_t, shift_t

    # ---- conv1 -> BN1 -> ReLU  (conv bias cancels under batch-stat BN) ----
    y1 = conv3x3(w1_ref)
    s1, t1 = bn_affine(y1, g1_ref, be1_ref)
    act1 = jnp.maximum(y1 * s1 + t1, 0.0)

    # act1 becomes the conv2 input: overwrite the pad interior (halo stays 0).
    pad_ref[:, 1:H + 1, :] = act1.reshape(N, H, WC)

    # ---- conv2 -> BN2 -> +residual -> ReLU ----
    y2 = conv3x3(w2_ref)
    s2, t2 = bn_affine(y2, g2_ref, be2_ref)
    res = xv.reshape(NH, WC)
    out = jnp.maximum(y2 * s2 + t2 + res, 0.0)
    out_ref[...] = out.reshape(N, H, WC)


def _conv_row_matrices(w_hwio, W):
    """HWIO (3,3,Cin,Cout) -> (3, W*Cin, W*Cout) block-Toeplitz matrices.

    mats[kh][u*Cin + ci, w*Cout + co] = w_hwio[kh, u - w + 1, ci, co] when
    0 <= u - w + 1 < 3, else 0 — so a SAME 3x3 conv along W is one matmul per
    kh and the W zero-padding is implicit (boundary taps get no weight rows).
    """
    KH, KW, Cin, Cout = w_hwio.shape
    mats = []
    for kh in range(KH):
        m = jnp.zeros((W * Cin, W * Cout), w_hwio.dtype)
        for kw in range(KW):
            band = jnp.eye(W, k=1 - kw, dtype=w_hwio.dtype)
            m = m + jnp.kron(band, w_hwio[kh, kw])
        mats.append(m)
    return jnp.stack(mats)


def residual_block(x_nchw, params):
    """ResidualBlock(in_c=C, out_c=C, stride=1, downsample=None) forward."""
    w1, b1, g1, be1, w2, b2, g2, be2 = params
    N, C, H, W = x_nchw.shape
    WC = W * C

    # NCHW -> NHWC -> lane-dense (N, H, W*C) slab (channels on the lane axis).
    x = jnp.transpose(x_nchw, (0, 2, 3, 1)).astype(jnp.float32).reshape(N, H, WC)

    w1m = _conv_row_matrices(w1.astype(jnp.float32), W)
    w2m = _conv_row_matrices(w2.astype(jnp.float32), W)
    # NOTE: conv biases b1/b2 shift the per-channel batch mean and cancel
    # exactly under training-mode BatchNorm, so the kernel does not need them.

    fold = jnp.tile(jnp.eye(C, dtype=jnp.float32), (W, 1))   # (W*C, C)
    foldt = fold.T                                           # (C, W*C)

    g1r = g1.reshape(1, C).astype(jnp.float32)
    be1r = be1.reshape(1, C).astype(jnp.float32)
    g2r = g2.reshape(1, C).astype(jnp.float32)
    be2r = be2.reshape(1, C).astype(jnp.float32)

    vmem = pl.BlockSpec(memory_space=pltpu.MemorySpace.VMEM)
    out = pl.pallas_call(
        _residual_block_kernel,
        out_shape=jax.ShapeDtypeStruct((N, H, WC), jnp.float32),
        in_specs=[vmem] * 9,
        out_specs=vmem,
        scratch_shapes=[pltpu.VMEM((N, H + 2, WC), jnp.float32)],  # single pad buf
        compiler_params=pltpu.CompilerParams(vmem_limit_bytes=32 * 1024 * 1024),
    )(x, w1m, w2m, g1r, be1r, g2r, be2r, fold, foldt)

    return jnp.transpose(out.reshape(N, H, W, C), (0, 3, 1, 2))   # back to NCHW


def residual_block_reference(x_nchw, params):
    """Pure-JAX reference matching PyTorch (training-mode BN) semantics."""
    w1, b1, g1, be1, w2, b2, g2, be2 = params
    x = jnp.transpose(x_nchw, (0, 2, 3, 1)).astype(jnp.float32)

    def conv(inp, w, b):
        y = lax.conv_general_dilated(
            inp, w, window_strides=(1, 1), padding=((1, 1), (1, 1)),
            dimension_numbers=('NHWC', 'HWIO', 'NHWC'))
        return y + b

    def bn(y, g, be):
        m = jnp.mean(y, axis=(0, 1, 2))
        v = jnp.mean((y - m) ** 2, axis=(0, 1, 2))
        return (y - m) * lax.rsqrt(v + EPS) * g + be

    out = jax.nn.relu(bn(conv(x, w1, b1), g1, be1))
    out = bn(conv(out, w2, b2), g2, be2)
    out = jax.nn.relu(out + x)
    return jnp.transpose(out, (0, 3, 1, 2))


if __name__ == "__main__":
    # Small deterministic setup: batch=2, channels=8, spatial=16x16 (W*C=128).
    N, C, H, W = 2, 8, 16, 16
    key = jax.random.PRNGKey(0)
    ks = jax.random.split(key, 9)

    x = jax.random.normal(ks[0], (N, C, H, W), jnp.float32)

    # conv weights in HWIO layout (3,3,Cin,Cout); BN gamma/beta per channel.
    w1 = jax.random.normal(ks[1], (3, 3, C, C), jnp.float32) * 0.1
    b1 = jax.random.normal(ks[2], (C,), jnp.float32) * 0.1
    g1 = 1.0 + 0.1 * jax.random.normal(ks[3], (C,), jnp.float32)
    be1 = 0.1 * jax.random.normal(ks[4], (C,), jnp.float32)
    w2 = jax.random.normal(ks[5], (3, 3, C, C), jnp.float32) * 0.1
    b2 = jax.random.normal(ks[6], (C,), jnp.float32) * 0.1
    g2 = 1.0 + 0.1 * jax.random.normal(ks[7], (C,), jnp.float32)
    be2 = 0.1 * jax.random.normal(ks[8], (C,), jnp.float32)
    params = (w1, b1, g1, be1, w2, b2, g2, be2)

    out = jax.block_until_ready(residual_block(x, params))
    ref = jax.block_until_ready(residual_block_reference(x, params))

    assert out.shape == (N, C, H, W)
    assert jnp.allclose(out, ref, rtol=1e-4, atol=1e-3), float(jnp.max(jnp.abs(out - ref)))
    print("KERNEL_OK")
</pallas_src>

<mosaic_0001>
module attributes {stable_mosaic.version = 11 : i64} {
  func.func @_residual_block_kernel(%arg0: memref<2x16x128xf32, #tpu.memory_space<vmem>>, %arg1: memref<3x128x128xf32, #tpu.memory_space<vmem>>, %arg2: memref<3x128x128xf32, #tpu.memory_space<vmem>>, %arg3: memref<1x8xf32, #tpu.memory_space<vmem>>, %arg4: memref<1x8xf32, #tpu.memory_space<vmem>>, %arg5: memref<1x8xf32, #tpu.memory_space<vmem>>, %arg6: memref<1x8xf32, #tpu.memory_space<vmem>>, %arg7: memref<128x8xf32, #tpu.memory_space<vmem>>, %arg8: memref<8x128xf32, #tpu.memory_space<vmem>>, %arg9: memref<2x16x128xf32, #tpu.memory_space<vmem>>, %arg10: memref<2x18x128xf32, #tpu.memory_space<vmem>>) attributes {dimension_semantics = [], scalar_prefetch = 0 : i64, scratch_operands = 1 : i64, tpu.core_type = #tpu.core_type<tc>} {
    %c0 = arith.constant 0 : index
    %c0_0 = arith.constant 0 : index
    %0 = vector.load %arg7[%c0, %c0_0] : memref<128x8xf32, #tpu.memory_space<vmem>>, vector<128x8xf32>
    %c0_1 = arith.constant 0 : index
    %c0_2 = arith.constant 0 : index
    %1 = vector.load %arg8[%c0_1, %c0_2] : memref<8x128xf32, #tpu.memory_space<vmem>>, vector<8x128xf32>
    %c0_3 = arith.constant 0 : index
    %c0_4 = arith.constant 0 : index
    %c0_5 = arith.constant 0 : index
    %2 = vector.load %arg0[%c0_3, %c0_4, %c0_5] : memref<2x16x128xf32, #tpu.memory_space<vmem>>, vector<2x16x128xf32>
    %cst = arith.constant 0.000000e+00 : f32
    %3 = vector.broadcast %cst : f32 to vector<2x1x128xf32>
    %c0_6 = arith.constant 0 : index
    %c0_7 = arith.constant 0 : index
    %c0_8 = arith.constant 0 : index
    %4 = vector.load %arg10[%c0_6, %c0_7, %c0_8] : memref<2x18x128xf32, #tpu.memory_space<vmem>>, vector<2x1x128xf32>
    tpu.vector_store %arg10[%c0_6, %c0_7, %c0_8], %3 {strides = array<i32>} : memref<2x18x128xf32, #tpu.memory_space<vmem>>, vector<2x1x128xf32>,
    %c0_9 = arith.constant 0 : index
    %c17 = arith.constant 17 : index
    %c0_10 = arith.constant 0 : index
    %5 = vector.load %arg10[%c0_9, %c17, %c0_10] : memref<2x18x128xf32, #tpu.memory_space<vmem>>, vector<2x1x128xf32>
    tpu.vector_store %arg10[%c0_9, %c17, %c0_10], %3 {strides = array<i32>} : memref<2x18x128xf32, #tpu.memory_space<vmem>>, vector<2x1x128xf32>,
    %c0_11 = arith.constant 0 : index
    %c1 = arith.constant 1 : index
    %c0_12 = arith.constant 0 : index
    %6 = vector.load %arg10[%c0_11, %c1, %c0_12] : memref<2x18x128xf32, #tpu.memory_space<vmem>>, vector<2x16x128xf32>
    tpu.vector_store %arg10[%c0_11, %c1, %c0_12], %2 {strides = array<i32>} : memref<2x18x128xf32, #tpu.memory_space<vmem>>, vector<2x16x128xf32>,
    %cst_13 = arith.constant 0.000000e+00 : f32
    %7 = vector.broadcast %cst_13 : f32 to vector<32x128xf32>
    %c0_14 = arith.constant 0 : index
    %c0_15 = arith.constant 0 : index
    %c0_16 = arith.constant 0 : index
    %8 = vector.load %arg10[%c0_14, %c0_15, %c0_16] : memref<2x18x128xf32, #tpu.memory_space<vmem>>, vector<2x16x128xf32>
    %9 = vector.shape_cast %8 : vector<2x16x128xf32> to vector<32x128xf32>
    %c0_17 = arith.constant 0 : index
    %c0_18 = arith.constant 0 : index
    %c0_19 = arith.constant 0 : index
    %10 = vector.load %arg1[%c0_17, %c0_18, %c0_19] : memref<3x128x128xf32, #tpu.memory_space<vmem>>, vector<1x128x128xf32>
    %11 = vector.shape_cast %10 : vector<1x128x128xf32> to vector<128x128xf32>
    %cst_20 = arith.constant dense<0.000000e+00> : vector<32x128xf32>
    %12 = tpu.matmul %9, %11, %cst_20 {dimension_numbers = #tpu.dot_dimension_numbers<[1], [0], [0], [1], [0, 0, 1, 1], [], []>} : vector<32x128xf32>, vector<128x128xf32>, vector<32x128xf32> -> vector<32x128xf32>
    %13 = arith.addf %7, %12 : vector<32x128xf32>
    %c0_21 = arith.constant 0 : index
    %c1_22 = arith.constant 1 : index
    %c0_23 = arith.constant 0 : index
    %14 = vector.load %arg10[%c0_21, %c1_22, %c0_23] : memref<2x18x128xf32, #tpu.memory_space<vmem>>, vector<2x16x128xf32>
    %15 = vector.shape_cast %14 : vector<2x16x128xf32> to vector<32x128xf32>
    %c1_24 = arith.constant 1 : index
    %c0_25 = arith.constant 0 : index
    %c0_26 = arith.constant 0 : index
    %16 = vector.load %arg1[%c1_24, %c0_25, %c0_26] : memref<3x128x128xf32, #tpu.memory_space<vmem>>, vector<1x128x128xf32>
    %17 = vector.shape_cast %16 : vector<1x128x128xf32> to vector<128x128xf32>
    %cst_27 = arith.constant dense<0.000000e+00> : vector<32x128xf32>
    %18 = tpu.matmul %15, %17, %cst_27 {dimension_numbers = #tpu.dot_dimension_numbers<[1], [0], [0], [1], [0, 0, 1, 1], [], []>} : vector<32x128xf32>, vector<128x128xf32>, vector<32x128xf32> -> vector<32x128xf32>
    %19 = arith.addf %13, %18 : vector<32x128xf32>
    %c0_28 = arith.constant 0 : index
    %c2 = arith.constant 2 : index
    %c0_29 = arith.constant 0 : index
    %20 = vector.load %arg10[%c0_28, %c2, %c0_29] : memref<2x18x128xf32, #tpu.memory_space<vmem>>, vector<2x16x128xf32>
    %21 = vector.shape_cast %20 : vector<2x16x128xf32> to vector<32x128xf32>
    %c2_30 = arith.constant 2 : index
    %c0_31 = arith.constant 0 : index
    %c0_32 = arith.constant 0 : index
    %22 = vector.load %arg1[%c2_30, %c0_31, %c0_32] : memref<3x128x128xf32, #tpu.memory_space<vmem>>, vector<1x128x128xf32>
    %23 = vector.shape_cast %22 : vector<1x128x128xf32> to vector<128x128xf32>
    %cst_33 = arith.constant dense<0.000000e+00> : vector<32x128xf32>
    %24 = tpu.matmul %21, %23, %cst_33 {dimension_numbers = #tpu.dot_dimension_numbers<[1], [0], [0], [1], [0, 0, 1, 1], [], []>} : vector<32x128xf32>, vector<128x128xf32>, vector<32x128xf32> -> vector<32x128xf32>
    %25 = arith.addf %19, %24 : vector<32x128xf32>
    %cst_34 = arith.constant dense<0.000000e+00> : vector<128xf32>
    %26 = vector.multi_reduction <add>, %25, %cst_34 [0] : vector<32x128xf32> to vector<128xf32>
    %27 = vector.shape_cast %26 : vector<128xf32> to vector<1x128xf32>
    %cst_35 = arith.constant dense<0.000000e+00> : vector<1x8xf32>
    %28 = tpu.matmul %27, %0, %cst_35 {dimension_numbers = #tpu.dot_dimension_numbers<[1], [0], [0], [1], [0, 0, 1, 1], [], []>} : vector<1x128xf32>, vector<128x8xf32>, vector<1x8xf32> -> vector<1x8xf32>
    %cst_36 = arith.constant 0.001953125 : f32
    %29 = vector.broadcast %cst_36 : f32 to vector<1x8xf32>
    %30 = arith.mulf %28, %29 : vector<1x8xf32>
    %cst_37 = arith.constant dense<0.000000e+00> : vector<1x128xf32>
    %31 = tpu.matmul %30, %1, %cst_37 {dimension_numbers = #tpu.dot_dimension_numbers<[1], [0], [0], [1], [0, 0, 1, 1], [], []>} : vector<1x8xf32>, vector<8x128xf32>, vector<1x128xf32> -> vector<1x128xf32>
    %32 = vector.broadcast %31 : vector<1x128xf32> to vector<32x128xf32>
    %33 = arith.subf %25, %32 : vector<32x128xf32>
    %34 = arith.mulf %33, %33 : vector<32x128xf32>
    %cst_38 = arith.constant dense<0.000000e+00> : vector<128xf32>
    %35 = vector.multi_reduction <add>, %34, %cst_38 [0] : vector<32x128xf32> to vector<128xf32>
    %36 = vector.shape_cast %35 : vector<128xf32> to vector<1x128xf32>
    %cst_39 = arith.constant dense<0.000000e+00> : vector<1x8xf32>
    %37 = tpu.matmul %36, %0, %cst_39 {dimension_numbers = #tpu.dot_dimension_numbers<[1], [0], [0], [1], [0, 0, 1, 1], [], []>} : vector<1x128xf32>, vector<128x8xf32>, vector<1x8xf32> -> vector<1x8xf32>
    %cst_40 = arith.constant 0.001953125 : f32
    %38 = vector.broadcast %cst_40 : f32 to vector<1x8xf32>
    %39 = arith.mulf %37, %38 : vector<1x8xf32>
    %c0_41 = arith.constant 0 : index
    %c0_42 = arith.constant 0 : index
    %40 = vector.load %arg3[%c0_41, %c0_42] : memref<1x8xf32, #tpu.memory_space<vmem>>, vector<1x8xf32>
    %cst_43 = arith.constant 9.99999974E-6 : f32
    %41 = vector.broadcast %cst_43 : f32 to vector<1x8xf32>
    %42 = arith.addf %39, %41 : vector<1x8xf32>
    %43 = math.rsqrt %42 : vector<1x8xf32>
    %44 = arith.mulf %40, %43 : vector<1x8xf32>
    %c0_44 = arith.constant 0 : index
    %c0_45 = arith.constant 0 : index
    %45 = vector.load %arg4[%c0_44, %c0_45] : memref<1x8xf32, #tpu.memory_space<vmem>>, vector<1x8xf32>
    %46 = arith.mulf %30, %44 : vector<1x8xf32>
    %47 = arith.subf %45, %46 : vector<1x8xf32>
    %cst_46 = arith.constant dense<0.000000e+00> : vector<1x128xf32>
    %48 = tpu.matmul %44, %1, %cst_46 {dimension_numbers = #tpu.dot_dimension_numbers<[1], [0], [0], [1], [0, 0, 1, 1], [], []>} : vector<1x8xf32>, vector<8x128xf32>, vector<1x128xf32> -> vector<1x128xf32>
    %cst_47 = arith.constant dense<0.000000e+00> : vector<1x128xf32>
    %49 = tpu.matmul %47, %1, %cst_47 {dimension_numbers = #tpu.dot_dimension_numbers<[1], [0], [0], [1], [0, 0, 1, 1], [], []>} : vector<1x8xf32>, vector<8x128xf32>, vector<1x128xf32> -> vector<1x128xf32>
    %50 = vector.broadcast %48 : vector<1x128xf32> to vector<32x128xf32>
    %51 = arith.mulf %25, %50 : vector<32x128xf32>
    %52 = vector.broadcast %49 : vector<1x128xf32> to vector<32x128xf32>
    %53 = arith.addf %51, %52 : vector<32x128xf32>
    %cst_48 = arith.constant 0.000000e+00 : f32
    %54 = vector.broadcast %cst_48 : f32 to vector<32x128xf32>
    %55 = arith.maximumf %53, %54 : vector<32x128xf32>
    %56 = vector.shape_cast %55 : vector<32x128xf32> to vector<2x16x128xf32>
    %c0_49 = arith.constant 0 : index
    %c1_50 = arith.constant 1 : index
    %c0_51 = arith.constant 0 : index
    %57 = vector.load %arg10[%c0_49, %c1_50, %c0_51] : memref<2x18x128xf32, #tpu.memory_space<vmem>>, vector<2x16x128xf32>
    tpu.vector_store %arg10[%c0_49, %c1_50, %c0_51], %56 {strides = array<i32>} : memref<2x18x128xf32, #tpu.memory_space<vmem>>, vector<2x16x128xf32>,
    %cst_52 = arith.constant 0.000000e+00 : f32
    %58 = vector.broadcast %cst_52 : f32 to vector<32x128xf32>
    %c0_53 = arith.constant 0 : index
    %c0_54 = arith.constant 0 : index
    %c0_55 = arith.constant 0 : index
    %59 = vector.load %arg10[%c0_53, %c0_54, %c0_55] : memref<2x18x128xf32, #tpu.memory_space<vmem>>, vector<2x16x128xf32>
    %60 = vector.shape_cast %59 : vector<2x16x128xf32> to vector<32x128xf32>
    %c0_56 = arith.constant 0 : index
    %c0_57 = arith.constant 0 : index
    %c0_58 = arith.constant 0 : index
    %61 = vector.load %arg2[%c0_56, %c0_57, %c0_58] : memref<3x128x128xf32, #tpu.memory_space<vmem>>, vector<1x128x128xf32>
    %62 = vector.shape_cast %61 : vector<1x128x128xf32> to vector<128x128xf32>
    %cst_59 = arith.constant dense<0.000000e+00> : vector<32x128xf32>
    %63 = tpu.matmul %60, %62, %cst_59 {dimension_numbers = #tpu.dot_dimension_numbers<[1], [0], [0], [1], [0, 0, 1, 1], [], []>} : vector<32x128xf32>, vector<128x128xf32>, vector<32x128xf32> -> vector<32x128xf32>
    %64 = arith.addf %58, %63 : vector<32x128xf32>
    %c0_60 = arith.constant 0 : index
    %c1_61 = arith.constant 1 : index
    %c0_62 = arith.constant 0 : index
    %65 = vector.load %arg10[%c0_60, %c1_61, %c0_62] : memref<2x18x128xf32, #tpu.memory_space<vmem>>, vector<2x16x128xf32>
    %66 = vector.shape_cast %65 : vector<2x16x128xf32> to vector<32x128xf32>
    %c1_63 = arith.constant 1 : index
    %c0_64 = arith.constant 0 : index
    %c0_65 = arith.constant 0 : index
    %67 = vector.load %arg2[%c1_63, %c0_64, %c0_65] : memref<3x128x128xf32, #tpu.memory_space<vmem>>, vector<1x128x128xf32>
    %68 = vector.shape_cast %67 : vector<1x128x128xf32> to vector<128x128xf32>
    %cst_66 = arith.constant dense<0.000000e+00> : vector<32x128xf32>
    %69 = tpu.matmul %66, %68, %cst_66 {dimension_numbers = #tpu.dot_dimension_numbers<[1], [0], [0], [1], [0, 0, 1, 1], [], []>} : vector<32x128xf32>, vector<128x128xf32>, vector<32x128xf32> -> vector<32x128xf32>
    %70 = arith.addf %64, %69 : vector<32x128xf32>
    %c0_67 = arith.constant 0 : index
    %c2_68 = arith.constant 2 : index
    %c0_69 = arith.constant 0 : index
    %71 = vector.load %arg10[%c0_67, %c2_68, %c0_69] : memref<2x18x128xf32, #tpu.memory_space<vmem>>, vector<2x16x128xf32>
    %72 = vector.shape_cast %71 : vector<2x16x128xf32> to vector<32x128xf32>
    %c2_70 = arith.constant 2 : index
    %c0_71 = arith.constant 0 : index
    %c0_72 = arith.constant 0 : index
    %73 = vector.load %arg2[%c2_70, %c0_71, %c0_72] : memref<3x128x128xf32, #tpu.memory_space<vmem>>, vector<1x128x128xf32>
    %74 = vector.shape_cast %73 : vector<1x128x128xf32> to vector<128x128xf32>
    %cst_73 = arith.constant dense<0.000000e+00> : vector<32x128xf32>
    %75 = tpu.matmul %72, %74, %cst_73 {dimension_numbers = #tpu.dot_dimension_numbers<[1], [0], [0], [1], [0, 0, 1, 1], [], []>} : vector<32x128xf32>, vector<128x128xf32>, vector<32x128xf32> -> vector<32x128xf32>
    %76 = arith.addf %70, %75 : vector<32x128xf32>
    %cst_74 = arith.constant dense<0.000000e+00> : vector<128xf32>
    %77 = vector.multi_reduction <add>, %76, %cst_74 [0] : vector<32x128xf32> to vector<128xf32>
    %78 = vector.shape_cast %77 : vector<128xf32> to vector<1x128xf32>
    %cst_75 = arith.constant dense<0.000000e+00> : vector<1x8xf32>
    %79 = tpu.matmul %78, %0, %cst_75 {dimension_numbers = #tpu.dot_dimension_numbers<[1], [0], [0], [1], [0, 0, 1, 1], [], []>} : vector<1x128xf32>, vector<128x8xf32>, vector<1x8xf32> -> vector<1x8xf32>
    %cst_76 = arith.constant 0.001953125 : f32
    %80 = vector.broadcast %cst_76 : f32 to vector<1x8xf32>
    %81 = arith.mulf %79, %80 : vector<1x8xf32>
    %cst_77 = arith.constant dense<0.000000e+00> : vector<1x128xf32>
    %82 = tpu.matmul %81, %1, %cst_77 {dimension_numbers = #tpu.dot_dimension_numbers<[1], [0], [0], [1], [0, 0, 1, 1], [], []>} : vector<1x8xf32>, vector<8x128xf32>, vector<1x128xf32> -> vector<1x128xf32>
    %83 = vector.broadcast %82 : vector<1x128xf32> to vector<32x128xf32>
    %84 = arith.subf %76, %83 : vector<32x128xf32>
    %85 = arith.mulf %84, %84 : vector<32x128xf32>
    %cst_78 = arith.constant dense<0.000000e+00> : vector<128xf32>
    %86 = vector.multi_reduction <add>, %85, %cst_78 [0] : vector<32x128xf32> to vector<128xf32>
    %87 = vector.shape_cast %86 : vector<128xf32> to vector<1x128xf32>
    %cst_79 = arith.constant dense<0.000000e+00> : vector<1x8xf32>
    %88 = tpu.matmul %87, %0, %cst_79 {dimension_numbers = #tpu.dot_dimension_numbers<[1], [0], [0], [1], [0, 0, 1, 1], [], []>} : vector<1x128xf32>, vector<128x8xf32>, vector<1x8xf32> -> vector<1x8xf32>
    %cst_80 = arith.constant 0.001953125 : f32
    %89 = vector.broadcast %cst_80 : f32 to vector<1x8xf32>
    %90 = arith.mulf %88, %89 : vector<1x8xf32>
    %c0_81 = arith.constant 0 : index
    %c0_82 = arith.constant 0 : index
    %91 = vector.load %arg5[%c0_81, %c0_82] : memref<1x8xf32, #tpu.memory_space<vmem>>, vector<1x8xf32>
    %cst_83 = arith.constant 9.99999974E-6 : f32
    %92 = vector.broadcast %cst_83 : f32 to vector<1x8xf32>
    %93 = arith.addf %90, %92 : vector<1x8xf32>
    %94 = math.rsqrt %93 : vector<1x8xf32>
    %95 = arith.mulf %91, %94 : vector<1x8xf32>
    %c0_84 = arith.constant 0 : index
    %c0_85 = arith.constant 0 : index
    %96 = vector.load %arg6[%c0_84, %c0_85] : memref<1x8xf32, #tpu.memory_space<vmem>>, vector<1x8xf32>
    %97 = arith.mulf %81, %95 : vector<1x8xf32>
    %98 = arith.subf %96, %97 : vector<1x8xf32>
    %cst_86 = arith.constant dense<0.000000e+00> : vector<1x128xf32>
    %99 = tpu.matmul %95, %1, %cst_86 {dimension_numbers = #tpu.dot_dimension_numbers<[1], [0], [0], [1], [0, 0, 1, 1], [], []>} : vector<1x8xf32>, vector<8x128xf32>, vector<1x128xf32> -> vector<1x128xf32>
    %cst_87 = arith.constant dense<0.000000e+00> : vector<1x128xf32>
    %100 = tpu.matmul %98, %1, %cst_87 {dimension_numbers = #tpu.dot_dimension_numbers<[1], [0], [0], [1], [0, 0, 1, 1], [], []>} : vector<1x8xf32>, vector<8x128xf32>, vector<1x128xf32> -> vector<1x128xf32>
    %101 = vector.shape_cast %2 : vector<2x16x128xf32> to vector<32x128xf32>
    %102 = vector.broadcast %99 : vector<1x128xf32> to vector<32x128xf32>
    %103 = arith.mulf %76, %102 : vector<32x128xf32>
    %104 = vector.broadcast %100 : vector<1x128xf32> to vector<32x128xf32>
    %105 = arith.addf %103, %104 : vector<32x128xf32>
    %106 = arith.addf %105, %101 : vector<32x128xf32>
    %cst_88 = arith.constant 0.000000e+00 : f32
    %107 = vector.broadcast %cst_88 : f32 to vector<32x128xf32>
    %108 = arith.maximumf %106, %107 : vector<32x128xf32>
    %109 = vector.shape_cast %108 : vector<32x128xf32> to vector<2x16x128xf32>
    %c0_89 = arith.constant 0 : index
    %c0_90 = arith.constant 0 : index
    %c0_91 = arith.constant 0 : index
    %110 = vector.load %arg9[%c0_89, %c0_90, %c0_91] : memref<2x16x128xf32, #tpu.memory_space<vmem>>, vector<2x16x128xf32>
    tpu.vector_store %arg9[%c0_89, %c0_90, %c0_91], %109 {strides = array<i32>} : memref<2x16x128xf32, #tpu.memory_space<vmem>>, vector<2x16x128xf32>,
    return
  }
}

</mosaic_0001>

<llo_original>
// kernel: tpu_custom_call.1
$region0: #{tpu_custom_call.1}
  #allocation0 [shape = 'u32[]', space=smem, size = 0x4, offset = 0x4, fixed_abs, tag = 'smem constant byte address 0x4 - core index']
  #allocation1 [shape = 'u32[144,128]{1,0:T(1,128)}', space=vmem, size = 0x12000, scoped, tag = 'internal scratch']
  #allocation2 [shape = 'f32[2,18,128]{2,1,0:T(8,128)}', space=vmem, size = 0x6000, scoped, tag = 'scratch operand']
  %s0 = inlined_call_operand.vmem [shape: f32[2,16,128], index: 0, kind: input, shape index: {}]
  %s1 = inlined_call_operand.hbm [shape: f32[3,128,128], index: 1, kind: input, shape index: {}]
  %s2 = inlined_call_operand.hbm [shape: f32[3,128,128], index: 2, kind: input, shape index: {}]
  %s3 = inlined_call_operand.vmem [shape: f32[1,8], index: 3, kind: input, shape index: {}]
  %s4 = inlined_call_operand.vmem [shape: f32[1,8], index: 4, kind: input, shape index: {}]
  %s5 = inlined_call_operand.vmem [shape: f32[1,8], index: 5, kind: input, shape index: {}]
  %s6 = inlined_call_operand.vmem [shape: f32[1,8], index: 6, kind: input, shape index: {}]
  %s7 = inlined_call_operand.vmem [shape: f32[128,8], index: 7, kind: input, shape index: {}]
  %s8 = inlined_call_operand.vmem [shape: f32[8,128], index: 8, kind: input, shape index: {}]
  %s9 = inlined_call_operand.hbm [shape: f32[2,16,128], index: 9, kind: output, shape index: {}]
  %s10 = sld [smem:[#allocation0]]
  $region54: #{tpu_custom_call.1} parent=0
    _
  %s12 = ssub.s32 1, %s10
  %s13 = scalar_select 0, %s12, %s10
  $region1: #{tpu_custom_call.1} parent=0
    #allocation3 [shape = 'u8[196608]{0}', space=vmem, size = 0x30000, scoped, tag = 'input window, operand 1, single buffered']
    #allocation4 [shape = 's32[1]{0}', space=sflag, size = 0x4, scoped, tag = 'scoped memory for tpu_custom_call.1']
    #allocation5 [shape = 's32[1]{0}', space=sflag, size = 0x4, scoped, tag = 'scoped memory for tpu_custom_call.1']
    #allocation6 [shape = 'u8[196608]{0}', space=vmem, size = 0x30000, scoped, tag = 'input window, operand 2, single buffered']
    #allocation7 [shape = 's32[1]{0}', space=sflag, size = 0x4, scoped, tag = 'scoped memory for tpu_custom_call.1']
    #allocation8 [shape = 'u8[16384]{0}', space=vmem, size = 0x4000, scoped, tag = 'output window, operand 0, single buffered']
    %14 = vsyncpa [#allocation4], 0
    %15 = vsyncpa [#allocation7], 0
    %16 = vsyncpa [#allocation5], 0
    // Predicated region
    $region2: #{tpu_custom_call.1} parent=1 // pred_check
      _
    $region3: #{tpu_custom_call.1} parent=1 // pred_check_branch
      %18 = sbr.rel (0) target = $region5
    $region4: #{tpu_custom_call.1} parent=1 // pred_region
      _
    $region5: #{tpu_custom_call.1} parent=1 // pred_fallthru
      _
    // Predicated region
    $region6: #{tpu_custom_call.1} parent=1 // pred_check
      _
    $region7: #{tpu_custom_call.1} parent=1 // pred_check_branch
      %20 = sbr.rel (0) target = $region9
    $region8: #{tpu_custom_call.1} parent=1 // pred_region
      %s22 = ssub.s32 6144, 6144
      %23 = vsyncadd [#allocation4], %s22
      %s24 = sshll.u32 [#allocation3], 4
      %s25 = int_to_ptr.vmem [resolvable:$true] %s24
      %30 = dma.hbm_to_vmem [thread:$0]  %s1, 6144, %s25, [#allocation4], 128, 128, 8
    $region9: #{tpu_custom_call.1} parent=1 // pred_fallthru
      _
    // Predicated region
    $region10: #{tpu_custom_call.1} parent=1 // pred_check
      _
    $region11: #{tpu_custom_call.1} parent=1 // pred_check_branch
      %32 = sbr.rel (0) target = $region13
    $region12: #{tpu_custom_call.1} parent=1 // pred_region
      %s34 = ssub.s32 6144, 6144
      %35 = vsyncadd [#allocation7], %s34
      %s36 = sshll.u32 [#allocation6], 4
      %s37 = int_to_ptr.vmem [resolvable:$true] %s36
      %42 = dma.hbm_to_vmem [thread:$0]  %s2, 6144, %s37, [#allocation7], 128, 128, 8
    $region13: #{tpu_custom_call.1} parent=1 // pred_fallthru
      _
    // Predicated region
    $region14: #{tpu_custom_call.1} parent=1 // pred_check
      _
    $region15: #{tpu_custom_call.1} parent=1 // pred_check_branch
      %44 = sbr.rel (0) target = $region17
    $region16: #{tpu_custom_call.1} parent=1 // pred_region
      _
    $region17: #{tpu_custom_call.1} parent=1 // pred_fallthru
      _
    // Predicated region
    $region18: #{tpu_custom_call.1} parent=1 // pred_check
      _
    $region19: #{tpu_custom_call.1} parent=1 // pred_check_branch
      %46 = sbr.rel (0) target = $region21
    $region20: #{tpu_custom_call.1} parent=1 // pred_region
      _
    $region21: #{tpu_custom_call.1} parent=1 // pred_fallthru
      _
    // Predicated region
    $region22: #{tpu_custom_call.1} parent=1 // pred_check
      _
    $region23: #{tpu_custom_call.1} parent=1 // pred_check_branch
      %48 = sbr.rel (0) target = $region25
    $region24: #{tpu_custom_call.1} parent=1 // pred_region
      _
    $region25: #{tpu_custom_call.1} parent=1 // pred_fallthru
      _
    // Predicated region
    $region26: #{tpu_custom_call.1} parent=1 // pred_check
      _
    $region27: #{tpu_custom_call.1} parent=1 // pred_check_branch
      %50 = sbr.rel (0) target = $region29
    $region28: #{tpu_custom_call.1} parent=1 // pred_region
      _
    $region29: #{tpu_custom_call.1} parent=1 // pred_fallthru
      _
    // Predicated region
    $region30: #{tpu_custom_call.1} parent=1 // pred_check
      _
    $region31: #{tpu_custom_call.1} parent=1 // pred_check_branch
      %52 = sbr.rel (0) target = $region33
    $region32: #{tpu_custom_call.1} parent=1 // pred_region
      _
    $region33: #{tpu_custom_call.1} parent=1 // pred_fallthru
      _
    // Predicated region
    $region34: #{tpu_custom_call.1} parent=1 // pred_check
      _
    $region35: #{tpu_custom_call.1} parent=1 // pred_check_branch
      %54 = sbr.rel (0) target = $region37
    $region36: #{tpu_custom_call.1} parent=1 // pred_region
      _
    $region37: #{tpu_custom_call.1} parent=1 // pred_fallthru
      _
    // Predicated region
    $region38: #{tpu_custom_call.1} parent=1 // pred_check
      _
    $region39: #{tpu_custom_call.1} parent=1 // pred_check_branch
      %56 = sbr.rel (0) target = $region41
    $region40: #{tpu_custom_call.1} parent=1 // pred_region
      %57 = dma.done [#allocation4], 6144
    $region41: #{tpu_custom_call.1} parent=1 // pred_fallthru
      _
    // Predicated region
    $region42: #{tpu_custom_call.1} parent=1 // pred_check
      _
    $region43: #{tpu_custom_call.1} parent=1 // pred_check_branch
      %59 = sbr.rel (0) target = $region45
    $region44: #{tpu_custom_call.1} parent=1 // pred_region
      %60 = dma.done [#allocation7], 6144
    $region45: #{tpu_custom_call.1} parent=1 // pred_fallthru
      _
    %v61 = vld [vmem:[%s7] sm:$0xff]
    %v62 = vld [vmem:[%s7 + $0x8] sm:$0xff]
    %v63 = vld [vmem:[%s7 + $0x10] sm:$0xff]
    %v64 = vld [vmem:[%s7 + $0x18] sm:$0xff]
    %v65 = vld [vmem:[%s7 + $0x20] sm:$0xff]
    %v66 = vld [vmem:[%s7 + $0x28] sm:$0xff]
    %v67 = vld [vmem:[%s7 + $0x30] sm:$0xff]
    %v68 = vld [vmem:[%s7 + $0x38] sm:$0xff]
    %v69 = vld [vmem:[%s7 + $0x40] sm:$0xff]
    %v70 = vld [vmem:[%s7 + $0x48] sm:$0xff]
    %v71 = vld [vmem:[%s7 + $0x50] sm:$0xff]
    %v72 = vld [vmem:[%s7 + $0x58] sm:$0xff]
    %v73 = vld [vmem:[%s7 + $0x60] sm:$0xff]
    %v74 = vld [vmem:[%s7 + $0x68] sm:$0xff]
    %v75 = vld [vmem:[%s7 + $0x70] sm:$0xff]
    %v76 = vld [vmem:[%s7 + $0x78] sm:$0xff]
    %v77 = vld [vmem:[%s8] sm:$0xff]
    %v78 = vld [vmem:[%s0] sm:$0xff]
    %v79 = vld [vmem:[%s0 + $0x8] sm:$0xff]
    %v80 = vld [vmem:[%s0 + $0x10] sm:$0xff]
    %v81 = vld [vmem:[%s0 + $0x18] sm:$0xff]
    %82 = vst [vmem:[#allocation2] sm:$0x1] 0.0
    %83 = vst [vmem:[#allocation2 + $0x18] sm:$0x1] 0.0
    %84 = vst [vmem:[#allocation2 + $0x11] sm:$0x1] 0.0
    %85 = vst [vmem:[#allocation2 + $0x29] sm:$0x1] 0.0
    %86 = vst [vmem:[#allocation2 + $0x1] sm:$0xff] %v78
    %87 = vst [vmem:[#allocation2 + $0x9] sm:$0xff] %v79
    %88 = vst [vmem:[#allocation2 + $0x19] sm:$0xff] %v80
    %89 = vst [vmem:[#allocation2 + $0x21] sm:$0xff] %v81
    %v90 = vld [vmem:[#allocation2] sm:$0xff]
    %v91 = vld [vmem:[#allocation2 + $0x8] sm:$0xff]
    %v92 = vld [vmem:[#allocation2 + $0x18] sm:$0xff]
    %v93 = vld [vmem:[#allocation2 + $0x20] sm:$0xff]
    %v94 = vld [vmem:[#allocation3] sm:$0xff]
    %v95 = vld [vmem:[#allocation3 + $0x8] sm:$0xff]
    %v96 = vld [vmem:[#allocation3 + $0x10] sm:$0xff]
    %v97 = vld [vmem:[#allocation3 + $0x18] sm:$0xff]
    %v98 = vld [vmem:[#allocation3 + $0x20] sm:$0xff]
    %v99 = vld [vmem:[#allocation3 + $0x28] sm:$0xff]
    %v100 = vld [vmem:[#allocation3 + $0x30] sm:$0xff]
    %v101 = vld [vmem:[#allocation3 + $0x38] sm:$0xff]
    %v102 = vld [vmem:[#allocation3 + $0x40] sm:$0xff]
    %v103 = vld [vmem:[#allocation3 + $0x48] sm:$0xff]
    %v104 = vld [vmem:[#allocation3 + $0x50] sm:$0xff]
    %v105 = vld [vmem:[#allocation3 + $0x58] sm:$0xff]
    %v106 = vld [vmem:[#allocation3 + $0x60] sm:$0xff]
    %v107 = vld [vmem:[#allocation3 + $0x68] sm:$0xff]
    %v108 = vld [vmem:[#allocation3 + $0x70] sm:$0xff]
    %v109 = vld [vmem:[#allocation3 + $0x78] sm:$0xff]
    %v110 = vld [vmem:[#allocation2 + $0x1] sm:$0xff]
    %v111 = vld [vmem:[#allocation2 + $0x9] sm:$0xff]
    %v112 = vld [vmem:[#allocation2 + $0x19] sm:$0xff]
    %v113 = vld [vmem:[#allocation2 + $0x21] sm:$0xff]
    %s114 = scalar_lea.vmem [#allocation3], 128
    %v115 = vld [vmem:[%s114] sm:$0xff]
    %v116 = vld [vmem:[%s114 + $0x8] sm:$0xff]
    %v117 = vld [vmem:[%s114 + $0x10] sm:$0xff]
    %v118 = vld [vmem:[%s114 + $0x18] sm:$0xff]
    %v119 = vld [vmem:[%s114 + $0x20] sm:$0xff]
    %v120 = vld [vmem:[%s114 + $0x28] sm:$0xff]
    %v121 = vld [vmem:[%s114 + $0x30] sm:$0xff]
    %v122 = vld [vmem:[%s114 + $0x38] sm:$0xff]
    %v123 = vld [vmem:[%s114 + $0x40] sm:$0xff]
    %v124 = vld [vmem:[%s114 + $0x48] sm:$0xff]
    %v125 = vld [vmem:[%s114 + $0x50] sm:$0xff]
    %v126 = vld [vmem:[%s114 + $0x58] sm:$0xff]
    %v127 = vld [vmem:[%s114 + $0x60] sm:$0xff]
    %v128 = vld [vmem:[%s114 + $0x68] sm:$0xff]
    %v129 = vld [vmem:[%s114 + $0x70] sm:$0xff]
    %v130 = vld [vmem:[%s114 + $0x78] sm:$0xff]
    %131 = vmatprep.subr.mxu0 0.0
    %132 = vmatpush1.msra.mxu0 %v115
    %133 = vmatprep.subr.mxu0 0.0
    %134 = vmatpush1.msra.mxu0 %v116
    %135 = vmatprep.subr.mxu0 0.0
    %136 = vmatpush1.msra.mxu0 %v117
    %137 = vmatprep.subr.mxu0 0.0
    %138 = vmatpush1.msra.mxu0 %v118
    %139 = vmatprep.subr.mxu0 0.0
    %140 = vmatpush1.msra.mxu0 %v119
    %141 = vmatprep.subr.mxu0 0.0
    %142 = vmatpush1.msra.mxu0 %v120
    %143 = vmatprep.subr.mxu0 0.0
    %144 = vmatpush1.msra.mxu0 %v121
    %145 = vmatprep.subr.mxu0 0.0
    %146 = vmatpush1.msra.mxu0 %v122
    %147 = vmatprep.subr.mxu0 0.0
    %148 = vmatpush1.msra.mxu0 %v123
    %149 = vmatprep.subr.mxu0 0.0
    %150 = vmatpush1.msra.mxu0 %v124
    %151 = vmatprep.subr.mxu0 0.0
    %152 = vmatpush1.msra.mxu0 %v125
    %153 = vmatprep.subr.mxu0 0.0
    %154 = vmatpush1.msra.mxu0 %v126
    %155 = vmatprep.subr.mxu0 0.0
    %156 = vmatpush1.msra.mxu0 %v127
    %157 = vmatprep.subr.mxu0 0.0
    %158 = vmatpush1.msra.mxu0 %v128
    %159 = vmatprep.subr.mxu0 0.0
    %160 = vmatpush1.msra.mxu0 %v129
    %161 = vmatprep.subr.mxu0 0.0
    %162 = vmatpush1.msra.mxu0 %v130
    %163 = vmatprep.subr.mxu0 0.0
    %164 = vmatpush1.msra.mxu0 0.0
    %165 = vmatprep.subr.mxu0 0.0
    %166 = vmatpush1.msra.mxu0 0.0
    %167 = vmatprep.subr.mxu0 0.0
    %168 = vmatpush1.msra.mxu0 0.0
    %169 = vmatprep.subr.mxu0 0.0
    %170 = vmatpush1.msra.mxu0 0.0
    %171 = vmatprep.subr.mxu0 0.0
    %172 = vmatpush1.msra.mxu0 0.0
    %173 = vmatprep.subr.mxu0 0.0
    %174 = vmatpush1.msra.mxu0 0.0
    %175 = vmatprep.subr.mxu0 0.0
    %176 = vmatpush1.msra.mxu0 0.0
    %177 = vmatprep.subr.mxu0 0.0
    %178 = vmatpush1.msra.mxu0 0.0
    %179 = vmatprep.subr.mxu0 0.0
    %180 = vmatpush1.msra.mxu0 0.0
    %181 = vmatprep.subr.mxu0 0.0
    %182 = vmatpush1.msra.mxu0 0.0
    %183 = vmatprep.subr.mxu0 0.0
    %184 = vmatpush1.msra.mxu0 0.0
    %185 = vmatprep.subr.mxu0 0.0
    %186 = vmatpush1.msra.mxu0 0.0
    %187 = vmatprep.subr.mxu0 0.0
    %188 = vmatpush1.msra.mxu0 0.0
    %189 = vmatprep.subr.mxu0 0.0
    %190 = vmatpush1.msra.mxu0 0.0
    %191 = vmatprep.subr.mxu0 0.0
    %192 = vmatpush1.msra.mxu0 0.0
    %193 = vmatprep.subr.mxu0 0.0
    %194 = vmatpush1.msra.mxu0 0.0
    %195 = vmatprep.mubr.f32.mxu0 0.0
    %196 = vmatmul.mubr.f32.gmra.mrb[0].mxu0 %v110
    %v197 = vpop.f32.mrb[0].mxu0
    %v198 = vadd.f32 0.0, %v197
    %v199 = vpop.f32.mrb[0].mxu0
    %200 = vmatprep.mubr.f32.mxu0 0.0
    %201 = vmatmul.mubr.f32.gmra.mrb[0].mxu0 %v111
    %v202 = vpop.f32.mrb[0].mxu0
    %v203 = vadd.f32 0.0, %v202
    %v204 = vpop.f32.mrb[0].mxu0
    %205 = vmatprep.mubr.f32.mxu0 0.0
    %206 = vmatmul.mubr.f32.gmra.mrb[0].mxu0 %v112
    %v207 = vpop.f32.mrb[0].mxu0
    %v208 = vadd.f32 0.0, %v207
    %v209 = vpop.f32.mrb[0].mxu0
    %210 = vmatprep.mubr.f32.mxu0 0.0
    %211 = vmatmul.mubr.f32.gmra.mrb[0].mxu0 %v113
    %v212 = vpop.f32.mrb[0].mxu0
    %v213 = vadd.f32 0.0, %v212
    %v214 = vpop.f32.mrb[0].mxu0
    %215 = vdwg.mxu0
    %216 = vmatprep.subr.mxu0 0.0
    %217 = vmatpush1.msra.mxu0 %v94
    %218 = vmatprep.subr.mxu0 0.0
    %219 = vmatpush1.msra.mxu0 %v95
    %220 = vmatprep.subr.mxu0 0.0
    %221 = vmatpush1.msra.mxu0 %v96
    %222 = vmatprep.subr.mxu0 0.0
    %223 = vmatpush1.msra.mxu0 %v97
    %224 = vmatprep.subr.mxu0 0.0
    %225 = vmatpush1.msra.mxu0 %v98
    %226 = vmatprep.subr.mxu0 0.0
    %227 = vmatpush1.msra.mxu0 %v99
    %228 = vmatprep.subr.mxu0 0.0
    %229 = vmatpush1.msra.mxu0 %v100
    %230 = vmatprep.subr.mxu0 0.0
    %231 = vmatpush1.msra.mxu0 %v101
    %232 = vmatprep.subr.mxu0 0.0
    %233 = vmatpush1.msra.mxu0 %v102
    %234 = vmatprep.subr.mxu0 0.0
    %235 = vmatpush1.msra.mxu0 %v103
    %236 = vmatprep.subr.mxu0 0.0
    %237 = vmatpush1.msra.mxu0 %v104
    %238 = vmatprep.subr.mxu0 0.0
    %239 = vmatpush1.msra.mxu0 %v105
    %240 = vmatprep.subr.mxu0 0.0
    %241 = vmatpush1.msra.mxu0 %v106
    %242 = vmatprep.subr.mxu0 0.0
    %243 = vmatpush1.msra.mxu0 %v107
    %244 = vmatprep.subr.mxu0 0.0
    %245 = vmatpush1.msra.mxu0 %v108
    %246 = vmatprep.subr.mxu0 0.0
    %247 = vmatpush1.msra.mxu0 %v109
    %248 = vmatprep.subr.mxu0 0.0
    %249 = vmatpush1.msra.mxu0 0.0
    %250 = vmatprep.subr.mxu0 0.0
    %251 = vmatpush1.msra.mxu0 0.0
    %252 = vmatprep.subr.mxu0 0.0
    %253 = vmatpush1.msra.mxu0 0.0
    %254 = vmatprep.subr.mxu0 0.0
    %255 = vmatpush1.msra.mxu0 0.0
    %256 = vmatprep.subr.mxu0 0.0
    %257 = vmatpush1.msra.mxu0 0.0
    %258 = vmatprep.subr.mxu0 0.0
    %259 = vmatpush1.msra.mxu0 0.0
    %260 = vmatprep.subr.mxu0 0.0
    %261 = vmatpush1.msra.mxu0 0.0
    %262 = vmatprep.subr.mxu0 0.0
    %263 = vmatpush1.msra.mxu0 0.0
    %264 = vmatprep.subr.mxu0 0.0
    %265 = vmatpush1.msra.mxu0 0.0
    %266 = vmatprep.subr.mxu0 0.0
    %267 = vmatpush1.msra.mxu0 0.0
    %268 = vmatprep.subr.mxu0 0.0
    %269 = vmatpush1.msra.mxu0 0.0
    %270 = vmatprep.subr.mxu0 0.0
    %271 = vmatpush1.msra.mxu0 0.0
    %272 = vmatprep.subr.mxu0 0.0
    %273 = vmatpush1.msra.mxu0 0.0
    %274 = vmatprep.subr.mxu0 0.0
    %275 = vmatpush1.msra.mxu0 0.0
    %276 = vmatprep.subr.mxu0 0.0
    %277 = vmatpush1.msra.mxu0 0.0
    %278 = vmatprep.subr.mxu0 0.0
    %279 = vmatpush1.msra.mxu0 0.0
    %280 = vmatprep.mubr.f32.mxu0 0.0
    %281 = vmatmul.mubr.f32.gmra.mrb[0].mxu0 %v90
    %v282 = vpop.f32.mrb[0].mxu0
    %v283 = vadd.f32 %v198, %v282
    %v284 = vpop.f32.mrb[0].mxu0
    %285 = vmatprep.mubr.f32.mxu0 0.0
    %286 = vmatmul.mubr.f32.gmra.mrb[0].mxu0 %v91
    %v287 = vpop.f32.mrb[0].mxu0
    %v288 = vadd.f32 %v203, %v287
    %v289 = vpop.f32.mrb[0].mxu0
    %290 = vmatprep.mubr.f32.mxu0 0.0
    %291 = vmatmul.mubr.f32.gmra.mrb[0].mxu0 %v92
    %v292 = vpop.f32.mrb[0].mxu0
    %v293 = vadd.f32 %v208, %v292
    %v294 = vpop.f32.mrb[0].mxu0
    %295 = vmatprep.mubr.f32.mxu0 0.0
    %296 = vmatmul.mubr.f32.gmra.mrb[0].mxu0 %v93
    %v297 = vpop.f32.mrb[0].mxu0
    %v298 = vadd.f32 %v213, %v297
    %v299 = vpop.f32.mrb[0].mxu0
    %300 = vdwg.mxu0
    %v301 = vld [vmem:[#allocation2 + $0x2] sm:$0xff]
    %v302 = vld [vmem:[#allocation2 + $0xa] sm:$0xff]
    %v303 = vld [vmem:[#allocation2 + $0x1a] sm:$0xff]
    %v304 = vld [vmem:[#allocation2 + $0x22] sm:$0xff]
    %s305 = scalar_lea.vmem [#allocation3], 256
    %v306 = vld [vmem:[%s305] sm:$0xff]
    %v307 = vld [vmem:[%s305 + $0x8] sm:$0xff]
    %v308 = vld [vmem:[%s305 + $0x10] sm:$0xff]
    %v309 = vld [vmem:[%s305 + $0x18] sm:$0xff]
    %v310 = vld [vmem:[%s305 + $0x20] sm:$0xff]
    %v311 = vld [vmem:[%s305 + $0x28] sm:$0xff]
    %v312 = vld [vmem:[%s305 + $0x30] sm:$0xff]
    %v313 = vld [vmem:[%s305 + $0x38] sm:$0xff]
    %v314 = vld [vmem:[%s305 + $0x40] sm:$0xff]
    %v315 = vld [vmem:[%s305 + $0x48] sm:$0xff]
    %v316 = vld [vmem:[%s305 + $0x50] sm:$0xff]
    %v317 = vld [vmem:[%s305 + $0x58] sm:$0xff]
    %v318 = vld [vmem:[%s305 + $0x60] sm:$0xff]
    %v319 = vld [vmem:[%s305 + $0x68] sm:$0xff]
    %v320 = vld [vmem:[%s305 + $0x70] sm:$0xff]
    %v321 = vld [vmem:[%s305 + $0x78] sm:$0xff]
    %322 = vmatprep.subr.mxu0 0.0
    %323 = vmatpush1.msra.mxu0 %v306
    %324 = vmatprep.subr.mxu0 0.0
    %325 = vmatpush1.msra.mxu0 %v307
    %326 = vmatprep.subr.mxu0 0.0
    %327 = vmatpush1.msra.mxu0 %v308
    %328 = vmatprep.subr.mxu0 0.0
    %329 = vmatpush1.msra.mxu0 %v309
    %330 = vmatprep.subr.mxu0 0.0
    %331 = vmatpush1.msra.mxu0 %v310
    %332 = vmatprep.subr.mxu0 0.0
    %333 = vmatpush1.msra.mxu0 %v311
    %334 = vmatprep.subr.mxu0 0.0
    %335 = vmatpush1.msra.mxu0 %v312
    %336 = vmatprep.subr.mxu0 0.0
    %337 = vmatpush1.msra.mxu0 %v313
    %338 = vmatprep.subr.mxu0 0.0
    %339 = vmatpush1.msra.mxu0 %v314
    %340 = vmatprep.subr.mxu0 0.0
    %341 = vmatpush1.msra.mxu0 %v315
    %342 = vmatprep.subr.mxu0 0.0
    %343 = vmatpush1.msra.mxu0 %v316
    %344 = vmatprep.subr.mxu0 0.0
    %345 = vmatpush1.msra.mxu0 %v317
    %346 = vmatprep.subr.mxu0 0.0
    %347 = vmatpush1.msra.mxu0 %v318
    %348 = vmatprep.subr.mxu0 0.0
    %349 = vmatpush1.msra.mxu0 %v319
    %350 = vmatprep.subr.mxu0 0.0
    %351 = vmatpush1.msra.mxu0 %v320
    %352 = vmatprep.subr.mxu0 0.0
    %353 = vmatpush1.msra.mxu0 %v321
    %354 = vmatprep.subr.mxu0 0.0
    %355 = vmatpush1.msra.mxu0 0.0
    %356 = vmatprep.subr.mxu0 0.0
    %357 = vmatpush1.msra.mxu0 0.0
    %358 = vmatprep.subr.mxu0 0.0
    %359 = vmatpush1.msra.mxu0 0.0
    %360 = vmatprep.subr.mxu0 0.0
    %361 = vmatpush1.msra.mxu0 0.0
    %362 = vmatprep.subr.mxu0 0.0
    %363 = vmatpush1.msra.mxu0 0.0
    %364 = vmatprep.subr.mxu0 0.0
    %365 = vmatpush1.msra.mxu0 0.0
    %366 = vmatprep.subr.mxu0 0.0
    %367 = vmatpush1.msra.mxu0 0.0
    %368 = vmatprep.subr.mxu0 0.0
    %369 = vmatpush1.msra.mxu0 0.0
    %370 = vmatprep.subr.mxu0 0.0
    %371 = vmatpush1.msra.mxu0 0.0
    %372 = vmatprep.subr.mxu0 0.0
    %373 = vmatpush1.msra.mxu0 0.0
    %374 = vmatprep.subr.mxu0 0.0
    %375 = vmatpush1.msra.mxu0 0.0
    %376 = vmatprep.subr.mxu0 0.0
    %377 = vmatpush1.msra.mxu0 0.0
    %378 = vmatprep.subr.mxu0 0.0
    %379 = vmatpush1.msra.mxu0 0.0
    %380 = vmatprep.subr.mxu0 0.0
    %381 = vmatpush1.msra.mxu0 0.0
    %382 = vmatprep.subr.mxu0 0.0
    %383 = vmatpush1.msra.mxu0 0.0
    %384 = vmatprep.subr.mxu0 0.0
    %385 = vmatpush1.msra.mxu0 0.0
    %386 = vmatprep.mubr.f32.mxu0 0.0
    %387 = vmatmul.mubr.f32.gmra.mrb[0].mxu0 %v301
    %v388 = vpop.f32.mrb[0].mxu0
    %v389 = vadd.f32 0.0, %v388
    %v390 = vpop.f32.mrb[0].mxu0
    %391 = vmatprep.mubr.f32.mxu0 0.0
    %392 = vmatmul.mubr.f32.gmra.mrb[0].mxu0 %v302
    %v393 = vpop.f32.mrb[0].mxu0
    %v394 = vadd.f32 0.0, %v393
    %v395 = vpop.f32.mrb[0].mxu0
    %396 = vmatprep.mubr.f32.mxu0 0.0
    %397 = vmatmul.mubr.f32.gmra.mrb[0].mxu0 %v303
    %v398 = vpop.f32.mrb[0].mxu0
    %v399 = vadd.f32 0.0, %v398
    %v400 = vpop.f32.mrb[0].mxu0
    %401 = vmatprep.mubr.f32.mxu0 0.0
    %402 = vmatmul.mubr.f32.gmra.mrb[0].mxu0 %v304
    %v403 = vpop.f32.mrb[0].mxu0
    %v404 = vadd.f32 0.0, %v403
    %v405 = vpop.f32.mrb[0].mxu0
    %406 = vdwg.mxu0
    %v407 = vadd.f32 %v283, %v389
    %v408 = vadd.f32 %v288, %v394
    %v409 = vadd.f32 %v293, %v399
    %v410 = vadd.f32 %v298, %v404
    %v411 = vadd.f32 %v407, %v408
    %v412 = vadd.f32 %v411, %v409
    %v413 = vadd.f32 %v412, %v410
    %v414 = vrot.slane %v413, 4
    %v415 = vadd.f32 %v413, %v414
    %v416 = vrot.slane %v415, 2
    %v417 = vadd.f32 %v415, %v416
    %v418 = vrot.slane %v417, 1
    %v419 = vadd.f32 %v417, %v418
    %420 = vmatprep.subr.mxu0 0.0
    %421 = vmatpush1.msra.mxu0 %v61
    %422 = vmatprep.subr.mxu0 0.0
    %423 = vmatpush1.msra.mxu0 %v62
    %424 = vmatprep.subr.mxu0 0.0
    %425 = vmatpush1.msra.mxu0 %v63
    %426 = vmatprep.subr.mxu0 0.0
    %427 = vmatpush1.msra.mxu0 %v64
    %428 = vmatprep.subr.mxu0 0.0
    %429 = vmatpush1.msra.mxu0 %v65
    %430 = vmatprep.subr.mxu0 0.0
    %431 = vmatpush1.msra.mxu0 %v66
    %432 = vmatprep.subr.mxu0 0.0
    %433 = vmatpush1.msra.mxu0 %v67
    %434 = vmatprep.subr.mxu0 0.0
    %435 = vmatpush1.msra.mxu0 %v68
    %436 = vmatprep.subr.mxu0 0.0
    %437 = vmatpush1.msra.mxu0 %v69
    %438 = vmatprep.subr.mxu0 0.0
    %439 = vmatpush1.msra.mxu0 %v70
    %440 = vmatprep.subr.mxu0 0.0
    %441 = vmatpush1.msra.mxu0 %v71
    %442 = vmatprep.subr.mxu0 0.0
    %443 = vmatpush1.msra.mxu0 %v72
    %444 = vmatprep.subr.mxu0 0.0
    %445 = vmatpush1.msra.mxu0 %v73
    %446 = vmatprep.subr.mxu0 0.0
    %447 = vmatpush1.msra.mxu0 %v74
    %448 = vmatprep.subr.mxu0 0.0
    %449 = vmatpush1.msra.mxu0 %v75
    %450 = vmatprep.subr.mxu0 0.0
    %451 = vmatpush1.msra.mxu0 %v76
    %452 = vmatprep.subr.mxu0 0.0
    %453 = vmatpush1.msra.mxu0 0.0
    %454 = vmatprep.subr.mxu0 0.0
    %455 = vmatpush1.msra.mxu0 0.0
    %456 = vmatprep.subr.mxu0 0.0
    %457 = vmatpush1.msra.mxu0 0.0
    %458 = vmatprep.subr.mxu0 0.0
    %459 = vmatpush1.msra.mxu0 0.0
    %460 = vmatprep.subr.mxu0 0.0
    %461 = vmatpush1.msra.mxu0 0.0
    %462 = vmatprep.subr.mxu0 0.0
    %463 = vmatpush1.msra.mxu0 0.0
    %464 = vmatprep.subr.mxu0 0.0
    %465 = vmatpush1.msra.mxu0 0.0
    %466 = vmatprep.subr.mxu0 0.0
    %467 = vmatpush1.msra.mxu0 0.0
    %468 = vmatprep.subr.mxu0 0.0
    %469 = vmatpush1.msra.mxu0 0.0
    %470 = vmatprep.subr.mxu0 0.0
    %471 = vmatpush1.msra.mxu0 0.0
    %472 = vmatprep.subr.mxu0 0.0
    %473 = vmatpush1.msra.mxu0 0.0
    %474 = vmatprep.subr.mxu0 0.0
    %475 = vmatpush1.msra.mxu0 0.0
    %476 = vmatprep.subr.mxu0 0.0
    %477 = vmatpush1.msra.mxu0 0.0
    %478 = vmatprep.subr.mxu0 0.0
    %479 = vmatpush1.msra.mxu0 0.0
    %480 = vmatprep.subr.mxu0 0.0
    %481 = vmatpush1.msra.mxu0 0.0
    %482 = vmatprep.subr.mxu0 0.0
    %483 = vmatpush1.msra.mxu0 0.0
    %484 = vmatprep.mubr.f32.mxu0 0.0
    %485 = vmatmul.mubr.f32.gmra.mrb[0].mxu0 %v419
    %v486 = vpop.f32.mrb[0].mxu0
    %v487 = vadd.f32 0.0, %v486
    %v488 = vpop.f32.mrb[0].mxu0
    %489 = vdwg.mxu0
    %v490 = vmul.f32 %v487, 0.001953125
    %vm491 = vcmask 64512
    %v493 = vsel %vm491, %v490, 0
    %495 = vmatprep.subr.mxu0 0.0
    %496 = vmatpush1.msra.mxu0 %v77
    %497 = vmatprep.subr.mxu0 0.0
    %498 = vmatpush1.msra.mxu0 0.0
    %499 = vmatprep.subr.mxu0 0.0
    %500 = vmatpush1.msra.mxu0 0.0
    %501 = vmatprep.subr.mxu0 0.0
    %502 = vmatpush1.msra.mxu0 0.0
    %503 = vmatprep.subr.mxu0 0.0
    %504 = vmatpush1.msra.mxu0 0.0
    %505 = vmatprep.subr.mxu0 0.0
    %506 = vmatpush1.msra.mxu0 0.0
    %507 = vmatprep.subr.mxu0 0.0
    %508 = vmatpush1.msra.mxu0 0.0
    %509 = vmatprep.subr.mxu0 0.0
    %510 = vmatpush1.msra.mxu0 0.0
    %511 = vmatprep.subr.mxu0 0.0
    %512 = vmatpush1.msra.mxu0 0.0
    %513 = vmatprep.subr.mxu0 0.0
    %514 = vmatpush1.msra.mxu0 0.0
    %515 = vmatprep.subr.mxu0 0.0
    %516 = vmatpush1.msra.mxu0 0.0
    %517 = vmatprep.subr.mxu0 0.0
    %518 = vmatpush1.msra.mxu0 0.0
    %519 = vmatprep.subr.mxu0 0.0
    %520 = vmatpush1.msra.mxu0 0.0
    %521 = vmatprep.subr.mxu0 0.0
    %522 = vmatpush1.msra.mxu0 0.0
    %523 = vmatprep.subr.mxu0 0.0
    %524 = vmatpush1.msra.mxu0 0.0
    %525 = vmatprep.subr.mxu0 0.0
    %526 = vmatpush1.msra.mxu0 0.0
    %527 = vmatprep.subr.mxu0 0.0
    %528 = vmatpush1.msra.mxu0 0.0
    %529 = vmatprep.subr.mxu0 0.0
    %530 = vmatpush1.msra.mxu0 0.0
    %531 = vmatprep.subr.mxu0 0.0
    %532 = vmatpush1.msra.mxu0 0.0
    %533 = vmatprep.subr.mxu0 0.0
    %534 = vmatpush1.msra.mxu0 0.0
    %535 = vmatprep.subr.mxu0 0.0
    %536 = vmatpush1.msra.mxu0 0.0
    %537 = vmatprep.subr.mxu0 0.0
    %538 = vmatpush1.msra.mxu0 0.0
    %539 = vmatprep.subr.mxu0 0.0
    %540 = vmatpush1.msra.mxu0 0.0
    %541 = vmatprep.subr.mxu0 0.0
    %542 = vmatpush1.msra.mxu0 0.0
    %543 = vmatprep.subr.mxu0 0.0
    %544 = vmatpush1.msra.mxu0 0.0
    %545 = vmatprep.subr.mxu0 0.0
    %546 = vmatpush1.msra.mxu0 0.0
    %547 = vmatprep.subr.mxu0 0.0
    %548 = vmatpush1.msra.mxu0 0.0
    %549 = vmatprep.subr.mxu0 0.0
    %550 = vmatpush1.msra.mxu0 0.0
    %551 = vmatprep.subr.mxu0 0.0
    %552 = vmatpush1.msra.mxu0 0.0
    %553 = vmatprep.subr.mxu0 0.0
    %554 = vmatpush1.msra.mxu0 0.0
    %555 = vmatprep.subr.mxu0 0.0
    %556 = vmatpush1.msra.mxu0 0.0
    %557 = vmatprep.subr.mxu0 0.0
    %558 = vmatpush1.msra.mxu0 0.0
    %559 = vmatprep.mubr.f32.mxu0 0.0
    %560 = vmatmul.mubr.f32.gmra.mrb[0].mxu0 %v493
    %v561 = vpop.f32.mrb[0].mxu0
    %v562 = vadd.f32 0.0, %v561
    %v563 = vpop.f32.mrb[0].mxu0
    %564 = vdwg.mxu0
    %v565 = vlaneseq
    %v566 = vshrl.u32 %v565, 7
    %v567 = vsub.s32 0, %v566
    %v568 = vrot.slane %v562, %v567
    %v569 = vsub.f32 %v407, %v568
    %v570 = vsub.f32 %v408, %v568
    %v571 = vsub.f32 %v409, %v568
    %v572 = vsub.f32 %v410, %v568
    %v573 = vmul.f32 %v569, %v569
    %v574 = vmul.f32 %v570, %v570
    %v575 = vmul.f32 %v571, %v571
    %v576 = vmul.f32 %v572, %v572
    %v577 = vadd.f32 %v573, %v574
    %v578 = vadd.f32 %v577, %v575
    %v579 = vadd.f32 %v578, %v576
    %v580 = vrot.slane %v579, 4
    %v581 = vadd.f32 %v579, %v580
    %v582 = vrot.slane %v581, 2
    %v583 = vadd.f32 %v581, %v582
    %v584 = vrot.slane %v583, 1
    %v585 = vadd.f32 %v583, %v584
    %586 = vmatprep.subr.mxu0 0.0
    %587 = vmatpush1.msra.mxu0 %v61
    %588 = vmatprep.subr.mxu0 0.0
    %589 = vmatpush1.msra.mxu0 %v62
    %590 = vmatprep.subr.mxu0 0.0
    %591 = vmatpush1.msra.mxu0 %v63
    %592 = vmatprep.subr.mxu0 0.0
    %593 = vmatpush1.msra.mxu0 %v64
    %594 = vmatprep.subr.mxu0 0.0
    %595 = vmatpush1.msra.mxu0 %v65
    %596 = vmatprep.subr.mxu0 0.0
    %597 = vmatpush1.msra.mxu0 %v66
    %598 = vmatprep.subr.mxu0 0.0
    %599 = vmatpush1.msra.mxu0 %v67
    %600 = vmatprep.subr.mxu0 0.0
    %601 = vmatpush1.msra.mxu0 %v68
    %602 = vmatprep.subr.mxu0 0.0
    %603 = vmatpush1.msra.mxu0 %v69
    %604 = vmatprep.subr.mxu0 0.0
    %605 = vmatpush1.msra.mxu0 %v70
    %606 = vmatprep.subr.mxu0 0.0
    %607 = vmatpush1.msra.mxu0 %v71
    %608 = vmatprep.subr.mxu0 0.0
    %609 = vmatpush1.msra.mxu0 %v72
    %610 = vmatprep.subr.mxu0 0.0
    %611 = vmatpush1.msra.mxu0 %v73
    %612 = vmatprep.subr.mxu0 0.0
    %613 = vmatpush1.msra.mxu0 %v74
    %614 = vmatprep.subr.mxu0 0.0
    %615 = vmatpush1.msra.mxu0 %v75
    %616 = vmatprep.subr.mxu0 0.0
    %617 = vmatpush1.msra.mxu0 %v76
    %618 = vmatprep.subr.mxu0 0.0
    %619 = vmatpush1.msra.mxu0 0.0
    %620 = vmatprep.subr.mxu0 0.0
    %621 = vmatpush1.msra.mxu0 0.0
    %622 = vmatprep.subr.mxu0 0.0
    %623 = vmatpush1.msra.mxu0 0.0
    %624 = vmatprep.subr.mxu0 0.0
    %625 = vmatpush1.msra.mxu0 0.0
    %626 = vmatprep.subr.mxu0 0.0
    %627 = vmatpush1.msra.mxu0 0.0
    %628 = vmatprep.subr.mxu0 0.0
    %629 = vmatpush1.msra.mxu0 0.0
    %630 = vmatprep.subr.mxu0 0.0
    %631 = vmatpush1.msra.mxu0 0.0
    %632 = vmatprep.subr.mxu0 0.0
    %633 = vmatpush1.msra.mxu0 0.0
    %634 = vmatprep.subr.mxu0 0.0
    %635 = vmatpush1.msra.mxu0 0.0
    %636 = vmatprep.subr.mxu0 0.0
    %637 = vmatpush1.msra.mxu0 0.0
    %638 = vmatprep.subr.mxu0 0.0
    %639 = vmatpush1.msra.mxu0 0.0
    %640 = vmatprep.subr.mxu0 0.0
    %641 = vmatpush1.msra.mxu0 0.0
    %642 = vmatprep.subr.mxu0 0.0
    %643 = vmatpush1.msra.mxu0 0.0
    %644 = vmatprep.subr.mxu0 0.0
    %645 = vmatpush1.msra.mxu0 0.0
    %646 = vmatprep.subr.mxu0 0.0
    %647 = vmatpush1.msra.mxu0 0.0
    %648 = vmatprep.subr.mxu0 0.0
    %649 = vmatpush1.msra.mxu0 0.0
    %650 = vmatprep.mubr.f32.mxu0 0.0
    %651 = vmatmul.mubr.f32.gmra.mrb[0].mxu0 %v585
    %v652 = vpop.f32.mrb[0].mxu0
    %v653 = vadd.f32 0.0, %v652
    %v654 = vpop.f32.mrb[0].mxu0
    %655 = vdwg.mxu0
    %v656 = vmul.f32 %v653, 0.001953125
    %v657 = vld [vmem:[%s3] sm:$0x1]
    %v658 = vadd.f32 %v656, 1e-05
    %v659 = vrsqrt.pop %v658
    %v660 = vmul.f32 %v657, %v659
    %v661 = vld [vmem:[%s4] sm:$0x1]
    %v662 = vmul.f32 %v490, %v660
    %v663 = vsub.f32 %v661, %v662
    %v665 = vsel %vm491, %v660, 0
    %667 = vmatprep.subr.mxu0 0.0
    %668 = vmatpush1.msra.mxu0 %v77
    %669 = vmatprep.subr.mxu0 0.0
    %670 = vmatpush1.msra.mxu0 0.0
    %671 = vmatprep.subr.mxu0 0.0
    %672 = vmatpush1.msra.mxu0 0.0
    %673 = vmatprep.subr.mxu0 0.0
    %674 = vmatpush1.msra.mxu0 0.0
    %675 = vmatprep.subr.mxu0 0.0
    %676 = vmatpush1.msra.mxu0 0.0
    %677 = vmatprep.subr.mxu0 0.0
    %678 = vmatpush1.msra.mxu0 0.0
    %679 = vmatprep.subr.mxu0 0.0
    %680 = vmatpush1.msra.mxu0 0.0
    %681 = vmatprep.subr.mxu0 0.0
    %682 = vmatpush1.msra.mxu0 0.0
    %683 = vmatprep.subr.mxu0 0.0
    %684 = vmatpush1.msra.mxu0 0.0
    %685 = vmatprep.subr.mxu0 0.0
    %686 = vmatpush1.msra.mxu0 0.0
    %687 = vmatprep.subr.mxu0 0.0
    %688 = vmatpush1.msra.mxu0 0.0
    %689 = vmatprep.subr.mxu0 0.0
    %690 = vmatpush1.msra.mxu0 0.0
    %691 = vmatprep.subr.mxu0 0.0
    %692 = vmatpush1.msra.mxu0 0.0
    %693 = vmatprep.subr.mxu0 0.0
    %694 = vmatpush1.msra.mxu0 0.0
    %695 = vmatprep.subr.mxu0 0.0
    %696 = vmatpush1.msra.mxu0 0.0
    %697 = vmatprep.subr.mxu0 0.0
    %698 = vmatpush1.msra.mxu0 0.0
    %699 = vmatprep.subr.mxu0 0.0
    %700 = vmatpush1.msra.mxu0 0.0
    %701 = vmatprep.subr.mxu0 0.0
    %702 = vmatpush1.msra.mxu0 0.0
    %703 = vmatprep.subr.mxu0 0.0
    %704 = vmatpush1.msra.mxu0 0.0
    %705 = vmatprep.subr.mxu0 0.0
    %706 = vmatpush1.msra.mxu0 0.0
    %707 = vmatprep.subr.mxu0 0.0
    %708 = vmatpush1.msra.mxu0 0.0
    %709 = vmatprep.subr.mxu0 0.0
    %710 = vmatpush1.msra.mxu0 0.0
    %711 = vmatprep.subr.mxu0 0.0
    %712 = vmatpush1.msra.mxu0 0.0
    %713 = vmatprep.subr.mxu0 0.0
    %714 = vmatpush1.msra.mxu0 0.0
    %715 = vmatprep.subr.mxu0 0.0
    %716 = vmatpush1.msra.mxu0 0.0
    %717 = vmatprep.subr.mxu0 0.0
    %718 = vmatpush1.msra.mxu0 0.0
    %719 = vmatprep.subr.mxu0 0.0
    %720 = vmatpush1.msra.mxu0 0.0
    %721 = vmatprep.subr.mxu0 0.0
    %722 = vmatpush1.msra.mxu0 0.0
    %723 = vmatprep.subr.mxu0 0.0
    %724 = vmatpush1.msra.mxu0 0.0
    %725 = vmatprep.subr.mxu0 0.0
    %726 = vmatpush1.msra.mxu0 0.0
    %727 = vmatprep.subr.mxu0 0.0
    %728 = vmatpush1.msra.mxu0 0.0
    %729 = vmatprep.subr.mxu0 0.0
    %730 = vmatpush1.msra.mxu0 0.0
    %731 = vmatprep.mubr.f32.mxu0 0.0
    %732 = vmatmul.mubr.f32.gmra.mrb[0].mxu0 %v665
    %v733 = vpop.f32.mrb[0].mxu0
    %v734 = vadd.f32 0.0, %v733
    %v735 = vpop.f32.mrb[0].mxu0
    %736 = vdwg.mxu0
    %v738 = vsel %vm491, %v663, 0
    %740 = vmatprep.subr.mxu0 0.0
    %741 = vmatpush1.msra.mxu0 %v77
    %742 = vmatprep.subr.mxu0 0.0
    %743 = vmatpush1.msra.mxu0 0.0
    %744 = vmatprep.subr.mxu0 0.0
    %745 = vmatpush1.msra.mxu0 0.0
    %746 = vmatprep.subr.mxu0 0.0
    %747 = vmatpush1.msra.mxu0 0.0
    %748 = vmatprep.subr.mxu0 0.0
    %749 = vmatpush1.msra.mxu0 0.0
    %750 = vmatprep.subr.mxu0 0.0
    %751 = vmatpush1.msra.mxu0 0.0
    %752 = vmatprep.subr.mxu0 0.0
    %753 = vmatpush1.msra.mxu0 0.0
    %754 = vmatprep.subr.mxu0 0.0
    %755 = vmatpush1.msra.mxu0 0.0
    %756 = vmatprep.subr.mxu0 0.0
    %757 = vmatpush1.msra.mxu0 0.0
    %758 = vmatprep.subr.mxu0 0.0
    %759 = vmatpush1.msra.mxu0 0.0
    %760 = vmatprep.subr.mxu0 0.0
    %761 = vmatpush1.msra.mxu0 0.0
    %762 = vmatprep.subr.mxu0 0.0
    %763 = vmatpush1.msra.mxu0 0.0
    %764 = vmatprep.subr.mxu0 0.0
    %765 = vmatpush1.msra.mxu0 0.0
    %766 = vmatprep.subr.mxu0 0.0
    %767 = vmatpush1.msra.mxu0 0.0
    %768 = vmatprep.subr.mxu0 0.0
    %769 = vmatpush1.msra.mxu0 0.0
    %770 = vmatprep.subr.mxu0 0.0
    %771 = vmatpush1.msra.mxu0 0.0
    %772 = vmatprep.subr.mxu0 0.0
    %773 = vmatpush1.msra.mxu0 0.0
    %774 = vmatprep.subr.mxu0 0.0
    %775 = vmatpush1.msra.mxu0 0.0
    %776 = vmatprep.subr.mxu0 0.0
    %777 = vmatpush1.msra.mxu0 0.0
    %778 = vmatprep.subr.mxu0 0.0
    %779 = vmatpush1.msra.mxu0 0.0
    %780 = vmatprep.subr.mxu0 0.0
    %781 = vmatpush1.msra.mxu0 0.0
    %782 = vmatprep.subr.mxu0 0.0
    %783 = vmatpush1.msra.mxu0 0.0
    %784 = vmatprep.subr.mxu0 0.0
    %785 = vmatpush1.msra.mxu0 0.0
    %786 = vmatprep.subr.mxu0 0.0
    %787 = vmatpush1.msra.mxu0 0.0
    %788 = vmatprep.subr.mxu0 0.0
    %789 = vmatpush1.msra.mxu0 0.0
    %790 = vmatprep.subr.mxu0 0.0
    %791 = vmatpush1.msra.mxu0 0.0
    %792 = vmatprep.subr.mxu0 0.0
    %793 = vmatpush1.msra.mxu0 0.0
    %794 = vmatprep.subr.mxu0 0.0
    %795 = vmatpush1.msra.mxu0 0.0
    %796 = vmatprep.subr.mxu0 0.0
    %797 = vmatpush1.msra.mxu0 0.0
    %798 = vmatprep.subr.mxu0 0.0
    %799 = vmatpush1.msra.mxu0 0.0
    %800 = vmatprep.subr.mxu0 0.0
    %801 = vmatpush1.msra.mxu0 0.0
    %802 = vmatprep.subr.mxu0 0.0
    %803 = vmatpush1.msra.mxu0 0.0
    %804 = vmatprep.mubr.f32.mxu0 0.0
    %805 = vmatmul.mubr.f32.gmra.mrb[0].mxu0 %v738
    %v806 = vpop.f32.mrb[0].mxu0
    %v807 = vadd.f32 0.0, %v806
    %v808 = vpop.f32.mrb[0].mxu0
    %809 = vdwg.mxu0
    %v810 = vlaneseq
    %v811 = vshrl.u32 %v810, 7
    %v812 = vsub.s32 0, %v811
    %v813 = vrot.slane %v734, %v812
    %v814 = vmul.f32 %v407, %v813
    %v815 = vmul.f32 %v408, %v813
    %v816 = vmul.f32 %v409, %v813
    %v817 = vmul.f32 %v410, %v813
    %v818 = vlaneseq
    %v819 = vshrl.u32 %v818, 7
    %v820 = vsub.s32 0, %v819
    %v821 = vrot.slane %v807, %v820
    %v822 = vadd.f32 %v814, %v821
    %v823 = vadd.f32 %v815, %v821
    %v824 = vadd.f32 %v816, %v821
    %v825 = vadd.f32 %v817, %v821
    %v826 = vmax.f32 %v822, 0.0
    %v827 = vmax.f32 %v823, 0.0
    %v828 = vmax.f32 %v824, 0.0
    %v829 = vmax.f32 %v825, 0.0
    %830 = vst [vmem:[#allocation2 + $0x1] sm:$0xff] %v826
    %831 = vst [vmem:[#allocation2 + $0x9] sm:$0xff] %v827
    %832 = vst [vmem:[#allocation2 + $0x19] sm:$0xff] %v828
    %833 = vst [vmem:[#allocation2 + $0x21] sm:$0xff] %v829
    %v834 = vld [vmem:[#allocation2] sm:$0xff]
    %v835 = vld [vmem:[#allocation2 + $0x8] sm:$0xff]
    %v836 = vld [vmem:[#allocation2 + $0x18] sm:$0xff]
    %v837 = vld [vmem:[#allocation2 + $0x20] sm:$0xff]
    %v838 = vld [vmem:[#allocation6] sm:$0xff]
    %v839 = vld [vmem:[#allocation6 + $0x8] sm:$0xff]
    %v840 = vld [vmem:[#allocation6 + $0x10] sm:$0xff]
    %v841 = vld [vmem:[#allocation6 + $0x18] sm:$0xff]
    %v842 = vld [vmem:[#allocation6 + $0x20] sm:$0xff]
    %v843 = vld [vmem:[#allocation6 + $0x28] sm:$0xff]
    %v844 = vld [vmem:[#allocation6 + $0x30] sm:$0xff]
    %v845 = vld [vmem:[#allocation6 + $0x38] sm:$0xff]
    %v846 = vld [vmem:[#allocation6 + $0x40] sm:$0xff]
    %v847 = vld [vmem:[#allocation6 + $0x48] sm:$0xff]
    %v848 = vld [vmem:[#allocation6 + $0x50] sm:$0xff]
    %v849 = vld [vmem:[#allocation6 + $0x58] sm:$0xff]
    %v850 = vld [vmem:[#allocation6 + $0x60] sm:$0xff]
    %v851 = vld [vmem:[#allocation6 + $0x68] sm:$0xff]
    %v852 = vld [vmem:[#allocation6 + $0x70] sm:$0xff]
    %v853 = vld [vmem:[#allocation6 + $0x78] sm:$0xff]
    %v854 = vld [vmem:[#allocation2 + $0x1] sm:$0xff]
    %v855 = vld [vmem:[#allocation2 + $0x9] sm:$0xff]
    %v856 = vld [vmem:[#allocation2 + $0x19] sm:$0xff]
    %v857 = vld [vmem:[#allocation2 + $0x21] sm:$0xff]
    %s858 = scalar_lea.vmem [#allocation6], 128
    %v859 = vld [vmem:[%s858] sm:$0xff]
    %v860 = vld [vmem:[%s858 + $0x8] sm:$0xff]
    %v861 = vld [vmem:[%s858 + $0x10] sm:$0xff]
    %v862 = vld [vmem:[%s858 + $0x18] sm:$0xff]
    %v863 = vld [vmem:[%s858 + $0x20] sm:$0xff]
    %v864 = vld [vmem:[%s858 + $0x28] sm:$0xff]
    %v865 = vld [vmem:[%s858 + $0x30] sm:$0xff]
    %v866 = vld [vmem:[%s858 + $0x38] sm:$0xff]
    %v867 = vld [vmem:[%s858 + $0x40] sm:$0xff]
    %v868 = vld [vmem:[%s858 + $0x48] sm:$0xff]
    %v869 = vld [vmem:[%s858 + $0x50] sm:$0xff]
    %v870 = vld [vmem:[%s858 + $0x58] sm:$0xff]
    %v871 = vld [vmem:[%s858 + $0x60] sm:$0xff]
    %v872 = vld [vmem:[%s858 + $0x68] sm:$0xff]
    %v873 = vld [vmem:[%s858 + $0x70] sm:$0xff]
    %v874 = vld [vmem:[%s858 + $0x78] sm:$0xff]
    %875 = vmatprep.subr.mxu0 0.0
    %876 = vmatpush1.msra.mxu0 %v859
    %877 = vmatprep.subr.mxu0 0.0
    %878 = vmatpush1.msra.mxu0 %v860
    %879 = vmatprep.subr.mxu0 0.0
    %880 = vmatpush1.msra.mxu0 %v861
    %881 = vmatprep.subr.mxu0 0.0
    %882 = vmatpush1.msra.mxu0 %v862
    %883 = vmatprep.subr.mxu0 0.0
    %884 = vmatpush1.msra.mxu0 %v863
    %885 = vmatprep.subr.mxu0 0.0
    %886 = vmatpush1.msra.mxu0 %v864
    %887 = vmatprep.subr.mxu0 0.0
    %888 = vmatpush1.msra.mxu0 %v865
    %889 = vmatprep.subr.mxu0 0.0
    %890 = vmatpush1.msra.mxu0 %v866
    %891 = vmatprep.subr.mxu0 0.0
    %892 = vmatpush1.msra.mxu0 %v867
    %893 = vmatprep.subr.mxu0 0.0
    %894 = vmatpush1.msra.mxu0 %v868
    %895 = vmatprep.subr.mxu0 0.0
    %896 = vmatpush1.msra.mxu0 %v869
    %897 = vmatprep.subr.mxu0 0.0
    %898 = vmatpush1.msra.mxu0 %v870
    %899 = vmatprep.subr.mxu0 0.0
    %900 = vmatpush1.msra.mxu0 %v871
    %901 = vmatprep.subr.mxu0 0.0
    %902 = vmatpush1.msra.mxu0 %v872
    %903 = vmatprep.subr.mxu0 0.0
    %904 = vmatpush1.msra.mxu0 %v873
    %905 = vmatprep.subr.mxu0 0.0
    %906 = vmatpush1.msra.mxu0 %v874
    %907 = vmatprep.subr.mxu0 0.0
    %908 = vmatpush1.msra.mxu0 0.0
    %909 = vmatprep.subr.mxu0 0.0
    %910 = vmatpush1.msra.mxu0 0.0
    %911 = vmatprep.subr.mxu0 0.0
    %912 = vmatpush1.msra.mxu0 0.0
    %913 = vmatprep.subr.mxu0 0.0
    %914 = vmatpush1.msra.mxu0 0.0
    %915 = vmatprep.subr.mxu0 0.0
    %916 = vmatpush1.msra.mxu0 0.0
    %917 = vmatprep.subr.mxu0 0.0
    %918 = vmatpush1.msra.mxu0 0.0
    %919 = vmatprep.subr.mxu0 0.0
    %920 = vmatpush1.msra.mxu0 0.0
    %921 = vmatprep.subr.mxu0 0.0
    %922 = vmatpush1.msra.mxu0 0.0
    %923 = vmatprep.subr.mxu0 0.0
    %924 = vmatpush1.msra.mxu0 0.0
    %925 = vmatprep.subr.mxu0 0.0
    %926 = vmatpush1.msra.mxu0 0.0
    %927 = vmatprep.subr.mxu0 0.0
    %928 = vmatpush1.msra.mxu0 0.0
    %929 = vmatprep.subr.mxu0 0.0
    %930 = vmatpush1.msra.mxu0 0.0
    %931 = vmatprep.subr.mxu0 0.0
    %932 = vmatpush1.msra.mxu0 0.0
    %933 = vmatprep.subr.mxu0 0.0
    %934 = vmatpush1.msra.mxu0 0.0
    %935 = vmatprep.subr.mxu0 0.0
    %936 = vmatpush1.msra.mxu0 0.0
    %937 = vmatprep.subr.mxu0 0.0
    %938 = vmatpush1.msra.mxu0 0.0
    %939 = vmatprep.mubr.f32.mxu0 0.0
    %940 = vmatmul.mubr.f32.gmra.mrb[0].mxu0 %v854
    %v941 = vpop.f32.mrb[0].mxu0
    %v942 = vadd.f32 0.0, %v941
    %v943 = vpop.f32.mrb[0].mxu0
    %944 = vmatprep.mubr.f32.mxu0 0.0
    %945 = vmatmul.mubr.f32.gmra.mrb[0].mxu0 %v855
    %v946 = vpop.f32.mrb[0].mxu0
    %v947 = vadd.f32 0.0, %v946
    %v948 = vpop.f32.mrb[0].mxu0
    %949 = vmatprep.mubr.f32.mxu0 0.0
    %950 = vmatmul.mubr.f32.gmra.mrb[0].mxu0 %v856
    %v951 = vpop.f32.mrb[0].mxu0
    %v952 = vadd.f32 0.0, %v951
    %v953 = vpop.f32.mrb[0].mxu0
    %954 = vmatprep.mubr.f32.mxu0 0.0
    %955 = vmatmul.mubr.f32.gmra.mrb[0].mxu0 %v857
    %v956 = vpop.f32.mrb[0].mxu0
    %v957 = vadd.f32 0.0, %v956
    %v958 = vpop.f32.mrb[0].mxu0
    %959 = vdwg.mxu0
    %960 = vmatprep.subr.mxu0 0.0
    %961 = vmatpush1.msra.mxu0 %v838
    %962 = vmatprep.subr.mxu0 0.0
    %963 = vmatpush1.msra.mxu0 %v839
    %964 = vmatprep.subr.mxu0 0.0
    %965 = vmatpush1.msra.mxu0 %v840
    %966 = vmatprep.subr.mxu0 0.0
    %967 = vmatpush1.msra.mxu0 %v841
    %968 = vmatprep.subr.mxu0 0.0
    %969 = vmatpush1.msra.mxu0 %v842
    %970 = vmatprep.subr.mxu0 0.0
    %971 = vmatpush1.msra.mxu0 %v843
    %972 = vmatprep.subr.mxu0 0.0
    %973 = vmatpush1.msra.mxu0 %v844
    %974 = vmatprep.subr.mxu0 0.0
    %975 = vmatpush1.msra.mxu0 %v845
    %976 = vmatprep.subr.mxu0 0.0
    %977 = vmatpush1.msra.mxu0 %v846
    %978 = vmatprep.subr.mxu0 0.0
    %979 = vmatpush1.msra.mxu0 %v847
    %980 = vmatprep.subr.mxu0 0.0
    %981 = vmatpush1.msra.mxu0 %v848
    %982 = vmatprep.subr.mxu0 0.0
    %983 = vmatpush1.msra.mxu0 %v849
    %984 = vmatprep.subr.mxu0 0.0
    %985 = vmatpush1.msra.mxu0 %v850
    %986 = vmatprep.subr.mxu0 0.0
    %987 = vmatpush1.msra.mxu0 %v851
    %988 = vmatprep.subr.mxu0 0.0
    %989 = vmatpush1.msra.mxu0 %v852
    %990 = vmatprep.subr.mxu0 0.0
    %991 = vmatpush1.msra.mxu0 %v853
    %992 = vmatprep.subr.mxu0 0.0
    %993 = vmatpush1.msra.mxu0 0.0
    %994 = vmatprep.subr.mxu0 0.0
    %995 = vmatpush1.msra.mxu0 0.0
    %996 = vmatprep.subr.mxu0 0.0
    %997 = vmatpush1.msra.mxu0 0.0
    %998 = vmatprep.subr.mxu0 0.0
    %999 = vmatpush1.msra.mxu0 0.0
    %1000 = vmatprep.subr.mxu0 0.0
    %1001 = vmatpush1.msra.mxu0 0.0
    %1002 = vmatprep.subr.mxu0 0.0
    %1003 = vmatpush1.msra.mxu0 0.0
    %1004 = vmatprep.subr.mxu0 0.0
    %1005 = vmatpush1.msra.mxu0 0.0
    %1006 = vmatprep.subr.mxu0 0.0
    %1007 = vmatpush1.msra.mxu0 0.0
    %1008 = vmatprep.subr.mxu0 0.0
    %1009 = vmatpush1.msra.mxu0 0.0
    %1010 = vmatprep.subr.mxu0 0.0
    %1011 = vmatpush1.msra.mxu0 0.0
    %1012 = vmatprep.subr.mxu0 0.0
    %1013 = vmatpush1.msra.mxu0 0.0
    %1014 = vmatprep.subr.mxu0 0.0
    %1015 = vmatpush1.msra.mxu0 0.0
    %1016 = vmatprep.subr.mxu0 0.0
    %1017 = vmatpush1.msra.mxu0 0.0
    %1018 = vmatprep.subr.mxu0 0.0
    %1019 = vmatpush1.msra.mxu0 0.0
    %1020 = vmatprep.subr.mxu0 0.0
    %1021 = vmatpush1.msra.mxu0 0.0
    %1022 = vmatprep.subr.mxu0 0.0
    %1023 = vmatpush1.msra.mxu0 0.0
    %1024 = vmatprep.mubr.f32.mxu0 0.0
    %1025 = vmatmul.mubr.f32.gmra.mrb[0].mxu0 %v834
    %v1026 = vpop.f32.mrb[0].mxu0
    %v1027 = vadd.f32 %v942, %v1026
    %v1028 = vpop.f32.mrb[0].mxu0
    %1029 = vmatprep.mubr.f32.mxu0 0.0
    %1030 = vmatmul.mubr.f32.gmra.mrb[0].mxu0 %v835
    %v1031 = vpop.f32.mrb[0].mxu0
    %v1032 = vadd.f32 %v947, %v1031
    %v1033 = vpop.f32.mrb[0].mxu0
    %1034 = vmatprep.mubr.f32.mxu0 0.0
    %1035 = vmatmul.mubr.f32.gmra.mrb[0].mxu0 %v836
    %v1036 = vpop.f32.mrb[0].mxu0
    %v1037 = vadd.f32 %v952, %v1036
    %v1038 = vpop.f32.mrb[0].mxu0
    %1039 = vmatprep.mubr.f32.mxu0 0.0
    %1040 = vmatmul.mubr.f32.gmra.mrb[0].mxu0 %v837
    %v1041 = vpop.f32.mrb[0].mxu0
    %v1042 = vadd.f32 %v957, %v1041
    %v1043 = vpop.f32.mrb[0].mxu0
    %1044 = vdwg.mxu0
    %v1045 = vld [vmem:[#allocation2 + $0x2] sm:$0xff]
    %v1046 = vld [vmem:[#allocation2 + $0xa] sm:$0xff]
    %v1047 = vld [vmem:[#allocation2 + $0x1a] sm:$0xff]
    %v1048 = vld [vmem:[#allocation2 + $0x22] sm:$0xff]
    %s1049 = scalar_lea.vmem [#allocation6], 256
    %v1050 = vld [vmem:[%s1049] sm:$0xff]
    %v1051 = vld [vmem:[%s1049 + $0x8] sm:$0xff]
    %v1052 = vld [vmem:[%s1049 + $0x10] sm:$0xff]
    %v1053 = vld [vmem:[%s1049 + $0x18] sm:$0xff]
    %v1054 = vld [vmem:[%s1049 + $0x20] sm:$0xff]
    %v1055 = vld [vmem:[%s1049 + $0x28] sm:$0xff]
    %v1056 = vld [vmem:[%s1049 + $0x30] sm:$0xff]
    %v1057 = vld [vmem:[%s1049 + $0x38] sm:$0xff]
    %v1058 = vld [vmem:[%s1049 + $0x40] sm:$0xff]
    %v1059 = vld [vmem:[%s1049 + $0x48] sm:$0xff]
    %v1060 = vld [vmem:[%s1049 + $0x50] sm:$0xff]
    %v1061 = vld [vmem:[%s1049 + $0x58] sm:$0xff]
    %v1062 = vld [vmem:[%s1049 + $0x60] sm:$0xff]
    %v1063 = vld [vmem:[%s1049 + $0x68] sm:$0xff]
    %v1064 = vld [vmem:[%s1049 + $0x70] sm:$0xff]
    %v1065 = vld [vmem:[%s1049 + $0x78] sm:$0xff]
    %1066 = vmatprep.subr.mxu0 0.0
    %1067 = vmatpush1.msra.mxu0 %v1050
    %1068 = vmatprep.subr.mxu0 0.0
    %1069 = vmatpush1.msra.mxu0 %v1051
    %1070 = vmatprep.subr.mxu0 0.0
    %1071 = vmatpush1.msra.mxu0 %v1052
    %1072 = vmatprep.subr.mxu0 0.0
    %1073 = vmatpush1.msra.mxu0 %v1053
    %1074 = vmatprep.subr.mxu0 0.0
    %1075 = vmatpush1.msra.mxu0 %v1054
    %1076 = vmatprep.subr.mxu0 0.0
    %1077 = vmatpush1.msra.mxu0 %v1055
    %1078 = vmatprep.subr.mxu0 0.0
    %1079 = vmatpush1.msra.mxu0 %v1056
    %1080 = vmatprep.subr.mxu0 0.0
    %1081 = vmatpush1.msra.mxu0 %v1057
    %1082 = vmatprep.subr.mxu0 0.0
    %1083 = vmatpush1.msra.mxu0 %v1058
    %1084 = vmatprep.subr.mxu0 0.0
    %1085 = vmatpush1.msra.mxu0 %v1059
    %1086 = vmatprep.subr.mxu0 0.0
    %1087 = vmatpush1.msra.mxu0 %v1060
    %1088 = vmatprep.subr.mxu0 0.0
    %1089 = vmatpush1.msra.mxu0 %v1061
    %1090 = vmatprep.subr.mxu0 0.0
    %1091 = vmatpush1.msra.mxu0 %v1062
    %1092 = vmatprep.subr.mxu0 0.0
    %1093 = vmatpush1.msra.mxu0 %v1063
    %1094 = vmatprep.subr.mxu0 0.0
    %1095 = vmatpush1.msra.mxu0 %v1064
    %1096 = vmatprep.subr.mxu0 0.0
    %1097 = vmatpush1.msra.mxu0 %v1065
    %1098 = vmatprep.subr.mxu0 0.0
    %1099 = vmatpush1.msra.mxu0 0.0
    %1100 = vmatprep.subr.mxu0 0.0
    %1101 = vmatpush1.msra.mxu0 0.0
    %1102 = vmatprep.subr.mxu0 0.0
    %1103 = vmatpush1.msra.mxu0 0.0
    %1104 = vmatprep.subr.mxu0 0.0
    %1105 = vmatpush1.msra.mxu0 0.0
    %1106 = vmatprep.subr.mxu0 0.0
    %1107 = vmatpush1.msra.mxu0 0.0
    %1108 = vmatprep.subr.mxu0 0.0
    %1109 = vmatpush1.msra.mxu0 0.0
    %1110 = vmatprep.subr.mxu0 0.0
    %1111 = vmatpush1.msra.mxu0 0.0
    %1112 = vmatprep.subr.mxu0 0.0
    %1113 = vmatpush1.msra.mxu0 0.0
    %1114 = vmatprep.subr.mxu0 0.0
    %1115 = vmatpush1.msra.mxu0 0.0
    %1116 = vmatprep.subr.mxu0 0.0
    %1117 = vmatpush1.msra.mxu0 0.0
    %1118 = vmatprep.subr.mxu0 0.0
    %1119 = vmatpush1.msra.mxu0 0.0
    %1120 = vmatprep.subr.mxu0 0.0
    %1121 = vmatpush1.msra.mxu0 0.0
    %1122 = vmatprep.subr.mxu0 0.0
    %1123 = vmatpush1.msra.mxu0 0.0
    %1124 = vmatprep.subr.mxu0 0.0
    %1125 = vmatpush1.msra.mxu0 0.0
    %1126 = vmatprep.subr.mxu0 0.0
    %1127 = vmatpush1.msra.mxu0 0.0
    %1128 = vmatprep.subr.mxu0 0.0
    %1129 = vmatpush1.msra.mxu0 0.0
    %1130 = vmatprep.mubr.f32.mxu0 0.0
    %1131 = vmatmul.mubr.f32.gmra.mrb[0].mxu0 %v1045
    %v1132 = vpop.f32.mrb[0].mxu0
    %v1133 = vadd.f32 0.0, %v1132
    %v1134 = vpop.f32.mrb[0].mxu0
    %1135 = vmatprep.mubr.f32.mxu0 0.0
    %1136 = vmatmul.mubr.f32.gmra.mrb[0].mxu0 %v1046
    %v1137 = vpop.f32.mrb[0].mxu0
    %v1138 = vadd.f32 0.0, %v1137
    %v1139 = vpop.f32.mrb[0].mxu0
    %1140 = vmatprep.mubr.f32.mxu0 0.0
    %1141 = vmatmul.mubr.f32.gmra.mrb[0].mxu0 %v1047
    %v1142 = vpop.f32.mrb[0].mxu0
    %v1143 = vadd.f32 0.0, %v1142
    %v1144 = vpop.f32.mrb[0].mxu0
    %1145 = vmatprep.mubr.f32.mxu0 0.0
    %1146 = vmatmul.mubr.f32.gmra.mrb[0].mxu0 %v1048
    %v1147 = vpop.f32.mrb[0].mxu0
    %v1148 = vadd.f32 0.0, %v1147
    %v1149 = vpop.f32.mrb[0].mxu0
    %1150 = vdwg.mxu0
    %v1151 = vadd.f32 %v1027, %v1133
    %v1152 = vadd.f32 %v1032, %v1138
    %v1153 = vadd.f32 %v1037, %v1143
    %v1154 = vadd.f32 %v1042, %v1148
    %v1155 = vadd.f32 %v1151, %v1152
    %v1156 = vadd.f32 %v1155, %v1153
    %v1157 = vadd.f32 %v1156, %v1154
    %v1158 = vrot.slane %v1157, 4
    %v1159 = vadd.f32 %v1157, %v1158
    %v1160 = vrot.slane %v1159, 2
    %v1161 = vadd.f32 %v1159, %v1160
    %v1162 = vrot.slane %v1161, 1
    %v1163 = vadd.f32 %v1161, %v1162
    %1164 = vmatprep.subr.mxu0 0.0
    %1165 = vmatpush1.msra.mxu0 %v61
    %1166 = vmatprep.subr.mxu0 0.0
    %1167 = vmatpush1.msra.mxu0 %v62
    %1168 = vmatprep.subr.mxu0 0.0
    %1169 = vmatpush1.msra.mxu0 %v63
    %1170 = vmatprep.subr.mxu0 0.0
    %1171 = vmatpush1.msra.mxu0 %v64
    %1172 = vmatprep.subr.mxu0 0.0
    %1173 = vmatpush1.msra.mxu0 %v65
    %1174 = vmatprep.subr.mxu0 0.0
    %1175 = vmatpush1.msra.mxu0 %v66
    %1176 = vmatprep.subr.mxu0 0.0
    %1177 = vmatpush1.msra.mxu0 %v67
    %1178 = vmatprep.subr.mxu0 0.0
    %1179 = vmatpush1.msra.mxu0 %v68
    %1180 = vmatprep.subr.mxu0 0.0
    %1181 = vmatpush1.msra.mxu0 %v69
    %1182 = vmatprep.subr.mxu0 0.0
    %1183 = vmatpush1.msra.mxu0 %v70
    %1184 = vmatprep.subr.mxu0 0.0
    %1185 = vmatpush1.msra.mxu0 %v71
    %1186 = vmatprep.subr.mxu0 0.0
    %1187 = vmatpush1.msra.mxu0 %v72
    %1188 = vmatprep.subr.mxu0 0.0
    %1189 = vmatpush1.msra.mxu0 %v73
    %1190 = vmatprep.subr.mxu0 0.0
    %1191 = vmatpush1.msra.mxu0 %v74
    %1192 = vmatprep.subr.mxu0 0.0
    %1193 = vmatpush1.msra.mxu0 %v75
    %1194 = vmatprep.subr.mxu0 0.0
    %1195 = vmatpush1.msra.mxu0 %v76
    %1196 = vmatprep.subr.mxu0 0.0
    %1197 = vmatpush1.msra.mxu0 0.0
    %1198 = vmatprep.subr.mxu0 0.0
    %1199 = vmatpush1.msra.mxu0 0.0
    %1200 = vmatprep.subr.mxu0 0.0
    %1201 = vmatpush1.msra.mxu0 0.0
    %1202 = vmatprep.subr.mxu0 0.0
    %1203 = vmatpush1.msra.mxu0 0.0
    %1204 = vmatprep.subr.mxu0 0.0
    %1205 = vmatpush1.msra.mxu0 0.0
    %1206 = vmatprep.subr.mxu0 0.0
    %1207 = vmatpush1.msra.mxu0 0.0
    %1208 = vmatprep.subr.mxu0 0.0
    %1209 = vmatpush1.msra.mxu0 0.0
    %1210 = vmatprep.subr.mxu0 0.0
    %1211 = vmatpush1.msra.mxu0 0.0
    %1212 = vmatprep.subr.mxu0 0.0
    %1213 = vmatpush1.msra.mxu0 0.0
    %1214 = vmatprep.subr.mxu0 0.0
    %1215 = vmatpush1.msra.mxu0 0.0
    %1216 = vmatprep.subr.mxu0 0.0
    %1217 = vmatpush1.msra.mxu0 0.0
    %1218 = vmatprep.subr.mxu0 0.0
    %1219 = vmatpush1.msra.mxu0 0.0
    %1220 = vmatprep.subr.mxu0 0.0
    %1221 = vmatpush1.msra.mxu0 0.0
    %1222 = vmatprep.subr.mxu0 0.0
    %1223 = vmatpush1.msra.mxu0 0.0
    %1224 = vmatprep.subr.mxu0 0.0
    %1225 = vmatpush1.msra.mxu0 0.0
    %1226 = vmatprep.subr.mxu0 0.0
    %1227 = vmatpush1.msra.mxu0 0.0
    %1228 = vmatprep.mubr.f32.mxu0 0.0
    %1229 = vmatmul.mubr.f32.gmra.mrb[0].mxu0 %v1163
    %v1230 = vpop.f32.mrb[0].mxu0
    %v1231 = vadd.f32 0.0, %v1230
    %v1232 = vpop.f32.mrb[0].mxu0
    %1233 = vdwg.mxu0
    %v1234 = vmul.f32 %v1231, 0.001953125
    %v1236 = vsel %vm491, %v1234, 0
    %1238 = vmatprep.subr.mxu0 0.0
    %1239 = vmatpush1.msra.mxu0 %v77
    %1240 = vmatprep.subr.mxu0 0.0
    %1241 = vmatpush1.msra.mxu0 0.0
    %1242 = vmatprep.subr.mxu0 0.0
    %1243 = vmatpush1.msra.mxu0 0.0
    %1244 = vmatprep.subr.mxu0 0.0
    %1245 = vmatpush1.msra.mxu0 0.0
    %1246 = vmatprep.subr.mxu0 0.0
    %1247 = vmatpush1.msra.mxu0 0.0
    %1248 = vmatprep.subr.mxu0 0.0
    %1249 = vmatpush1.msra.mxu0 0.0
    %1250 = vmatprep.subr.mxu0 0.0
    %1251 = vmatpush1.msra.mxu0 0.0
    %1252 = vmatprep.subr.mxu0 0.0
    %1253 = vmatpush1.msra.mxu0 0.0
    %1254 = vmatprep.subr.mxu0 0.0
    %1255 = vmatpush1.msra.mxu0 0.0
    %1256 = vmatprep.subr.mxu0 0.0
    %1257 = vmatpush1.msra.mxu0 0.0
    %1258 = vmatprep.subr.mxu0 0.0
    %1259 = vmatpush1.msra.mxu0 0.0
    %1260 = vmatprep.subr.mxu0 0.0
    %1261 = vmatpush1.msra.mxu0 0.0
    %1262 = vmatprep.subr.mxu0 0.0
    %1263 = vmatpush1.msra.mxu0 0.0
    %1264 = vmatprep.subr.mxu0 0.0
    %1265 = vmatpush1.msra.mxu0 0.0
    %1266 = vmatprep.subr.mxu0 0.0
    %1267 = vmatpush1.msra.mxu0 0.0
    %1268 = vmatprep.subr.mxu0 0.0
    %1269 = vmatpush1.msra.mxu0 0.0
    %1270 = vmatprep.subr.mxu0 0.0
    %1271 = vmatpush1.msra.mxu0 0.0
    %1272 = vmatprep.subr.mxu0 0.0
    %1273 = vmatpush1.msra.mxu0 0.0
    %1274 = vmatprep.subr.mxu0 0.0
    %1275 = vmatpush1.msra.mxu0 0.0
    %1276 = vmatprep.subr.mxu0 0.0
    %1277 = vmatpush1.msra.mxu0 0.0
    %1278 = vmatprep.subr.mxu0 0.0
    %1279 = vmatpush1.msra.mxu0 0.0
    %1280 = vmatprep.subr.mxu0 0.0
    %1281 = vmatpush1.msra.mxu0 0.0
    %1282 = vmatprep.subr.mxu0 0.0
    %1283 = vmatpush1.msra.mxu0 0.0
    %1284 = vmatprep.subr.mxu0 0.0
    %1285 = vmatpush1.msra.mxu0 0.0
    %1286 = vmatprep.subr.mxu0 0.0
    %1287 = vmatpush1.msra.mxu0 0.0
    %1288 = vmatprep.subr.mxu0 0.0
    %1289 = vmatpush1.msra.mxu0 0.0
    %1290 = vmatprep.subr.mxu0 0.0
    %1291 = vmatpush1.msra.mxu0 0.0
    %1292 = vmatprep.subr.mxu0 0.0
    %1293 = vmatpush1.msra.mxu0 0.0
    %1294 = vmatprep.subr.mxu0 0.0
    %1295 = vmatpush1.msra.mxu0 0.0
    %1296 = vmatprep.subr.mxu0 0.0
    %1297 = vmatpush1.msra.mxu0 0.0
    %1298 = vmatprep.subr.mxu0 0.0
    %1299 = vmatpush1.msra.mxu0 0.0
    %1300 = vmatprep.subr.mxu0 0.0
    %1301 = vmatpush1.msra.mxu0 0.0
    %1302 = vmatprep.mubr.f32.mxu0 0.0
    %1303 = vmatmul.mubr.f32.gmra.mrb[0].mxu0 %v1236
    %v1304 = vpop.f32.mrb[0].mxu0
    %v1305 = vadd.f32 0.0, %v1304
    %v1306 = vpop.f32.mrb[0].mxu0
    %1307 = vdwg.mxu0
    %v1308 = vlaneseq
    %v1309 = vshrl.u32 %v1308, 7
    %v1310 = vsub.s32 0, %v1309
    %v1311 = vrot.slane %v1305, %v1310
    %v1312 = vsub.f32 %v1151, %v1311
    %v1313 = vsub.f32 %v1152, %v1311
    %v1314 = vsub.f32 %v1153, %v1311
    %v1315 = vsub.f32 %v1154, %v1311
    %v1316 = vmul.f32 %v1312, %v1312
    %v1317 = vmul.f32 %v1313, %v1313
    %v1318 = vmul.f32 %v1314, %v1314
    %v1319 = vmul.f32 %v1315, %v1315
    %v1320 = vadd.f32 %v1316, %v1317
    %v1321 = vadd.f32 %v1320, %v1318
    %v1322 = vadd.f32 %v1321, %v1319
    %v1323 = vrot.slane %v1322, 4
    %v1324 = vadd.f32 %v1322, %v1323
    %v1325 = vrot.slane %v1324, 2
    %v1326 = vadd.f32 %v1324, %v1325
    %v1327 = vrot.slane %v1326, 1
    %v1328 = vadd.f32 %v1326, %v1327
    %1329 = vmatprep.subr.mxu0 0.0
    %1330 = vmatpush1.msra.mxu0 %v61
    %1331 = vmatprep.subr.mxu0 0.0
    %1332 = vmatpush1.msra.mxu0 %v62
    %1333 = vmatprep.subr.mxu0 0.0
    %1334 = vmatpush1.msra.mxu0 %v63
    %1335 = vmatprep.subr.mxu0 0.0
    %1336 = vmatpush1.msra.mxu0 %v64
    %1337 = vmatprep.subr.mxu0 0.0
    %1338 = vmatpush1.msra.mxu0 %v65
    %1339 = vmatprep.subr.mxu0 0.0
    %1340 = vmatpush1.msra.mxu0 %v66
    %1341 = vmatprep.subr.mxu0 0.0
    %1342 = vmatpush1.msra.mxu0 %v67
    %1343 = vmatprep.subr.mxu0 0.0
    %1344 = vmatpush1.msra.mxu0 %v68
    %1345 = vmatprep.subr.mxu0 0.0
    %1346 = vmatpush1.msra.mxu0 %v69
    %1347 = vmatprep.subr.mxu0 0.0
    %1348 = vmatpush1.msra.mxu0 %v70
    %1349 = vmatprep.subr.mxu0 0.0
    %1350 = vmatpush1.msra.mxu0 %v71
    %1351 = vmatprep.subr.mxu0 0.0
    %1352 = vmatpush1.msra.mxu0 %v72
    %1353 = vmatprep.subr.mxu0 0.0
    %1354 = vmatpush1.msra.mxu0 %v73
    %1355 = vmatprep.subr.mxu0 0.0
    %1356 = vmatpush1.msra.mxu0 %v74
    %1357 = vmatprep.subr.mxu0 0.0
    %1358 = vmatpush1.msra.mxu0 %v75
    %1359 = vmatprep.subr.mxu0 0.0
    %1360 = vmatpush1.msra.mxu0 %v76
    %1361 = vmatprep.subr.mxu0 0.0
    %1362 = vmatpush1.msra.mxu0 0.0
    %1363 = vmatprep.subr.mxu0 0.0
    %1364 = vmatpush1.msra.mxu0 0.0
    %1365 = vmatprep.subr.mxu0 0.0
    %1366 = vmatpush1.msra.mxu0 0.0
    %1367 = vmatprep.subr.mxu0 0.0
    %1368 = vmatpush1.msra.mxu0 0.0
    %1369 = vmatprep.subr.mxu0 0.0
    %1370 = vmatpush1.msra.mxu0 0.0
    %1371 = vmatprep.subr.mxu0 0.0
    %1372 = vmatpush1.msra.mxu0 0.0
    %1373 = vmatprep.subr.mxu0 0.0
    %1374 = vmatpush1.msra.mxu0 0.0
    %1375 = vmatprep.subr.mxu0 0.0
    %1376 = vmatpush1.msra.mxu0 0.0
    %1377 = vmatprep.subr.mxu0 0.0
    %1378 = vmatpush1.msra.mxu0 0.0
    %1379 = vmatprep.subr.mxu0 0.0
    %1380 = vmatpush1.msra.mxu0 0.0
    %1381 = vmatprep.subr.mxu0 0.0
    %1382 = vmatpush1.msra.mxu0 0.0
    %1383 = vmatprep.subr.mxu0 0.0
    %1384 = vmatpush1.msra.mxu0 0.0
    %1385 = vmatprep.subr.mxu0 0.0
    %1386 = vmatpush1.msra.mxu0 0.0
    %1387 = vmatprep.subr.mxu0 0.0
    %1388 = vmatpush1.msra.mxu0 0.0
    %1389 = vmatprep.subr.mxu0 0.0
    %1390 = vmatpush1.msra.mxu0 0.0
    %1391 = vmatprep.subr.mxu0 0.0
    %1392 = vmatpush1.msra.mxu0 0.0
    %1393 = vmatprep.mubr.f32.mxu0 0.0
    %1394 = vmatmul.mubr.f32.gmra.mrb[0].mxu0 %v1328
    %v1395 = vpop.f32.mrb[0].mxu0
    %v1396 = vadd.f32 0.0, %v1395
    %v1397 = vpop.f32.mrb[0].mxu0
    %1398 = vdwg.mxu0
    %v1399 = vmul.f32 %v1396, 0.001953125
    %v1400 = vld [vmem:[%s5] sm:$0x1]
    %v1401 = vadd.f32 %v1399, 1e-05
    %v1402 = vrsqrt.pop %v1401
    %v1403 = vmul.f32 %v1400, %v1402
    %v1404 = vld [vmem:[%s6] sm:$0x1]
    %v1405 = vmul.f32 %v1234, %v1403
    %v1406 = vsub.f32 %v1404, %v1405
    %v1408 = vsel %vm491, %v1403, 0
    %1410 = vmatprep.subr.mxu0 0.0
    %1411 = vmatpush1.msra.mxu0 %v77
    %1412 = vmatprep.subr.mxu0 0.0
    %1413 = vmatpush1.msra.mxu0 0.0
    %1414 = vmatprep.subr.mxu0 0.0
    %1415 = vmatpush1.msra.mxu0 0.0
    %1416 = vmatprep.subr.mxu0 0.0
    %1417 = vmatpush1.msra.mxu0 0.0
    %1418 = vmatprep.subr.mxu0 0.0
    %1419 = vmatpush1.msra.mxu0 0.0
    %1420 = vmatprep.subr.mxu0 0.0
    %1421 = vmatpush1.msra.mxu0 0.0
    %1422 = vmatprep.subr.mxu0 0.0
    %1423 = vmatpush1.msra.mxu0 0.0
    %1424 = vmatprep.subr.mxu0 0.0
    %1425 = vmatpush1.msra.mxu0 0.0
    %1426 = vmatprep.subr.mxu0 0.0
    %1427 = vmatpush1.msra.mxu0 0.0
    %1428 = vmatprep.subr.mxu0 0.0
    %1429 = vmatpush1.msra.mxu0 0.0
    %1430 = vmatprep.subr.mxu0 0.0
    %1431 = vmatpush1.msra.mxu0 0.0
    %1432 = vmatprep.subr.mxu0 0.0
    %1433 = vmatpush1.msra.mxu0 0.0
    %1434 = vmatprep.subr.mxu0 0.0
    %1435 = vmatpush1.msra.mxu0 0.0
    %1436 = vmatprep.subr.mxu0 0.0
    %1437 = vmatpush1.msra.mxu0 0.0
    %1438 = vmatprep.subr.mxu0 0.0
    %1439 = vmatpush1.msra.mxu0 0.0
    %1440 = vmatprep.subr.mxu0 0.0
    %1441 = vmatpush1.msra.mxu0 0.0
    %1442 = vmatprep.subr.mxu0 0.0
    %1443 = vmatpush1.msra.mxu0 0.0
    %1444 = vmatprep.subr.mxu0 0.0
    %1445 = vmatpush1.msra.mxu0 0.0
    %1446 = vmatprep.subr.mxu0 0.0
    %1447 = vmatpush1.msra.mxu0 0.0
    %1448 = vmatprep.subr.mxu0 0.0
    %1449 = vmatpush1.msra.mxu0 0.0
    %1450 = vmatprep.subr.mxu0 0.0
    %1451 = vmatpush1.msra.mxu0 0.0
    %1452 = vmatprep.subr.mxu0 0.0
    %1453 = vmatpush1.msra.mxu0 0.0
    %1454 = vmatprep.subr.mxu0 0.0
    %1455 = vmatpush1.msra.mxu0 0.0
    %1456 = vmatprep.subr.mxu0 0.0
    %1457 = vmatpush1.msra.mxu0 0.0
    %1458 = vmatprep.subr.mxu0 0.0
    %1459 = vmatpush1.msra.mxu0 0.0
    %1460 = vmatprep.subr.mxu0 0.0
    %1461 = vmatpush1.msra.mxu0 0.0
    %1462 = vmatprep.subr.mxu0 0.0
    %1463 = vmatpush1.msra.mxu0 0.0
    %1464 = vmatprep.subr.mxu0 0.0
    %1465 = vmatpush1.msra.mxu0 0.0
    %1466 = vmatprep.subr.mxu0 0.0
    %1467 = vmatpush1.msra.mxu0 0.0
    %1468 = vmatprep.subr.mxu0 0.0
    %1469 = vmatpush1.msra.mxu0 0.0
    %1470 = vmatprep.subr.mxu0 0.0
    %1471 = vmatpush1.msra.mxu0 0.0
    %1472 = vmatprep.subr.mxu0 0.0
    %1473 = vmatpush1.msra.mxu0 0.0
    %1474 = vmatprep.mubr.f32.mxu0 0.0
    %1475 = vmatmul.mubr.f32.gmra.mrb[0].mxu0 %v1408
    %v1476 = vpop.f32.mrb[0].mxu0
    %v1477 = vadd.f32 0.0, %v1476
    %v1478 = vpop.f32.mrb[0].mxu0
    %1479 = vdwg.mxu0
    %v1481 = vsel %vm491, %v1406, 0
    %1483 = vmatprep.subr.mxu0 0.0
    %1484 = vmatpush1.msra.mxu0 %v77
    %1485 = vmatprep.subr.mxu0 0.0
    %1486 = vmatpush1.msra.mxu0 0.0
    %1487 = vmatprep.subr.mxu0 0.0
    %1488 = vmatpush1.msra.mxu0 0.0
    %1489 = vmatprep.subr.mxu0 0.0
    %1490 = vmatpush1.msra.mxu0 0.0
    %1491 = vmatprep.subr.mxu0 0.0
    %1492 = vmatpush1.msra.mxu0 0.0
    %1493 = vmatprep.subr.mxu0 0.0
    %1494 = vmatpush1.msra.mxu0 0.0
    %1495 = vmatprep.subr.mxu0 0.0
    %1496 = vmatpush1.msra.mxu0 0.0
    %1497 = vmatprep.subr.mxu0 0.0
    %1498 = vmatpush1.msra.mxu0 0.0
    %1499 = vmatprep.subr.mxu0 0.0
    %1500 = vmatpush1.msra.mxu0 0.0
    %1501 = vmatprep.subr.mxu0 0.0
    %1502 = vmatpush1.msra.mxu0 0.0
    %1503 = vmatprep.subr.mxu0 0.0
    %1504 = vmatpush1.msra.mxu0 0.0
    %1505 = vmatprep.subr.mxu0 0.0
    %1506 = vmatpush1.msra.mxu0 0.0
    %1507 = vmatprep.subr.mxu0 0.0
    %1508 = vmatpush1.msra.mxu0 0.0
    %1509 = vmatprep.subr.mxu0 0.0
    %1510 = vmatpush1.msra.mxu0 0.0
    %1511 = vmatprep.subr.mxu0 0.0
    %1512 = vmatpush1.msra.mxu0 0.0
    %1513 = vmatprep.subr.mxu0 0.0
    %1514 = vmatpush1.msra.mxu0 0.0
    %1515 = vmatprep.subr.mxu0 0.0
    %1516 = vmatpush1.msra.mxu0 0.0
    %1517 = vmatprep.subr.mxu0 0.0
    %1518 = vmatpush1.msra.mxu0 0.0
    %1519 = vmatprep.subr.mxu0 0.0
    %1520 = vmatpush1.msra.mxu0 0.0
    %1521 = vmatprep.subr.mxu0 0.0
    %1522 = vmatpush1.msra.mxu0 0.0
    %1523 = vmatprep.subr.mxu0 0.0
    %1524 = vmatpush1.msra.mxu0 0.0
    %1525 = vmatprep.subr.mxu0 0.0
    %1526 = vmatpush1.msra.mxu0 0.0
    %1527 = vmatprep.subr.mxu0 0.0
    %1528 = vmatpush1.msra.mxu0 0.0
    %1529 = vmatprep.subr.mxu0 0.0
    %1530 = vmatpush1.msra.mxu0 0.0
    %1531 = vmatprep.subr.mxu0 0.0
    %1532 = vmatpush1.msra.mxu0 0.0
    %1533 = vmatprep.subr.mxu0 0.0
    %1534 = vmatpush1.msra.mxu0 0.0
    %1535 = vmatprep.subr.mxu0 0.0
    %1536 = vmatpush1.msra.mxu0 0.0
    %1537 = vmatprep.subr.mxu0 0.0
    %1538 = vmatpush1.msra.mxu0 0.0
    %1539 = vmatprep.subr.mxu0 0.0
    %1540 = vmatpush1.msra.mxu0 0.0
    %1541 = vmatprep.subr.mxu0 0.0
    %1542 = vmatpush1.msra.mxu0 0.0
    %1543 = vmatprep.subr.mxu0 0.0
    %1544 = vmatpush1.msra.mxu0 0.0
    %1545 = vmatprep.subr.mxu0 0.0
    %1546 = vmatpush1.msra.mxu0 0.0
    %1547 = vmatprep.mubr.f32.mxu0 0.0
    %1548 = vmatmul.mubr.f32.gmra.mrb[0].mxu0 %v1481
    %v1549 = vpop.f32.mrb[0].mxu0
    %v1550 = vadd.f32 0.0, %v1549
    %v1551 = vpop.f32.mrb[0].mxu0
    %1552 = vdwg.mxu0
    %v1553 = vlaneseq
    %v1554 = vshrl.u32 %v1553, 7
    %v1555 = vsub.s32 0, %v1554
    %v1556 = vrot.slane %v1477, %v1555
    %v1557 = vmul.f32 %v1151, %v1556
    %v1558 = vmul.f32 %v1152, %v1556
    %v1559 = vmul.f32 %v1153, %v1556
    %v1560 = vmul.f32 %v1154, %v1556
    %v1561 = vlaneseq
    %v1562 = vshrl.u32 %v1561, 7
    %v1563 = vsub.s32 0, %v1562
    %v1564 = vrot.slane %v1550, %v1563
    %v1565 = vadd.f32 %v1557, %v1564
    %v1566 = vadd.f32 %v1558, %v1564
    %v1567 = vadd.f32 %v1559, %v1564
    %v1568 = vadd.f32 %v1560, %v1564
    %v1569 = vadd.f32 %v1565, %v78
    %v1570 = vadd.f32 %v1566, %v79
    %v1571 = vadd.f32 %v1567, %v80
    %v1572 = vadd.f32 %v1568, %v81
    %v1573 = vmax.f32 %v1569, 0.0
    %v1574 = vmax.f32 %v1570, 0.0
    %v1575 = vmax.f32 %v1571, 0.0
    %v1576 = vmax.f32 %v1572, 0.0
    %1577 = vst [vmem:[#allocation8] sm:$0xff] %v1573
    %1578 = vst [vmem:[#allocation8 + $0x8] sm:$0xff] %v1574
    %1579 = vst [vmem:[#allocation8 + $0x10] sm:$0xff] %v1575
    %1580 = vst [vmem:[#allocation8 + $0x18] sm:$0xff] %v1576
    // Predicated region
    $region46: #{tpu_custom_call.1} parent=1 // pred_check
      _
    $region47: #{tpu_custom_call.1} parent=1 // pred_check_branch
      %1582 = sbr.rel (0) target = $region49
    $region48: #{tpu_custom_call.1} parent=1 // pred_region
      %s1584 = ssub.s32 512, 512
      %1585 = vsyncadd [#allocation5], %s1584
      %s1586 = sshll.u32 [#allocation8], 4
      %s1587 = int_to_ptr.vmem [resolvable:$true] %s1586
      %1592 = dma.vmem_to_hbm [thread:$0]  %s1587, 512, %s9, [#allocation5], 128, 128, 8
    $region49: #{tpu_custom_call.1} parent=1 // pred_fallthru
      _
    // Predicated region
    $region50: #{tpu_custom_call.1} parent=1 // pred_check
      _
    $region51: #{tpu_custom_call.1} parent=1 // pred_check_branch
      %1594 = sbr.rel (0) target = $region53
    $region52: #{tpu_custom_call.1} parent=1 // pred_region
      %1595 = dma.done [#allocation5], 512
    $region53: #{tpu_custom_call.1} parent=1 // pred_fallthru
      _
    %1596 = vsyncpa [#allocation4], 1
    %1597 = vsyncpa [#allocation7], 1
    %1598 = vsyncpa [#allocation5], 1

</llo_original>
